<compile_context>
chip_gen: v6e
topology: v6e:2x2x1
jax: 0.10.0
libtpu: 0.0.40
codegen_flags: <defaults>
</compile_context>

<pallas_src>
import jax
import jax.numpy as jnp
from jax import lax
from jax.experimental import pallas as pl
from jax.experimental.pallas import tpu as pltpu


# ----------------------------- Pallas kernels -----------------------------

def _conv_pool_kernel(p_ref, w_ref, b_ref, o_ref):
    """Composed 5x5 conv (conv2∘conv1) + bias + ReLU + 2x2 max-pool, one image.

    p_ref : (1, 576, 25) bf16  im2col patches, rows ordered (dy, dx, ph, pw)
    w_ref : (25, 64)     bf16  composed conv weights (tap, out_channel)
    b_ref : (1, 64)      f32   composed conv bias
    o_ref : (1, 144, 64) bf16  pooled output, row = ph*12 + pw, lane = channel
    """
    y = jnp.dot(p_ref[0], w_ref[...], preferred_element_type=jnp.float32)  # (576, 64)
    y = jnp.maximum(y + b_ref[...], 0.0)                                   # bias + ReLU
    # Row r = dy*288 + dx*144 + ph*12 + pw, so 2x2 max-pool == max over the
    # four 144-row blocks (all slice offsets are multiples of 8 -> clean vregs).
    pooled = jnp.maximum(jnp.maximum(y[0:144], y[144:288]),
                         jnp.maximum(y[288:432], y[432:576]))              # (144, 64)
    o_ref[0] = pooled.astype(o_ref.dtype)


def conv_pool(patches, w_conv, b_conv):
    """patches (N, 576, 25) bf16 -> pooled (N, 144, 64) bf16."""
    N = patches.shape[0]
    return pl.pallas_call(
        _conv_pool_kernel,
        out_shape=jax.ShapeDtypeStruct((N, 144, 64), jnp.bfloat16),
        grid_spec=pltpu.PrefetchScalarGridSpec(
            num_scalar_prefetch=0,
            grid=(N,),
            in_specs=[
                pl.BlockSpec((1, 576, 25), lambda b: (b, 0, 0)),
                pl.BlockSpec((25, 64), lambda b: (0, 0)),
                pl.BlockSpec((1, 64), lambda b: (0, 0)),
            ],
            out_specs=pl.BlockSpec((1, 144, 64), lambda b: (b, 0, 0)),
        ),
        compiler_params=pltpu.CompilerParams(
            dimension_semantics=("parallel",)),
    )(patches, w_conv, b_conv)


def _fc_head_kernel(a_ref, w1_ref, b1_ref, w2_ref, b2_ref, o_ref, acc_ref):
    """fc1 (K-tiled, f32 VMEM accumulator) with fc2 fused into the epilogue."""
    k = pl.program_id(0)

    @pl.when(k == 0)
    def _():
        acc_ref[...] = jnp.zeros_like(acc_ref)

    acc_ref[...] += jnp.dot(a_ref[...], w1_ref[...],
                            preferred_element_type=jnp.float32)

    @pl.when(k == pl.num_programs(0) - 1)
    def _():
        h = acc_ref[...] + b1_ref[...]                      # fc1 bias, (N, 128) f32
        # dropout2: eval-mode identity.  fc2 kept in f32 (tiny 128x62 weight).
        logits = jnp.dot(h, w2_ref[...],
                         preferred_element_type=jnp.float32) + b2_ref[...]
        o_ref[...] = logits.astype(o_ref.dtype)


def fc_head(flat, w1m, b1m, w2m, b2m, *, tk=2304):
    """flat (N, 9216) bf16 -> logits (N, 62) f32."""
    N, K = flat.shape
    F1 = w1m.shape[1]   # 128
    F2 = w2m.shape[1]   # 62
    assert K % tk == 0
    return pl.pallas_call(
        _fc_head_kernel,
        out_shape=jax.ShapeDtypeStruct((N, F2), jnp.float32),
        grid_spec=pltpu.PrefetchScalarGridSpec(
            num_scalar_prefetch=0,
            grid=(K // tk,),
            in_specs=[
                pl.BlockSpec((N, tk), lambda k: (0, k)),
                pl.BlockSpec((tk, F1), lambda k: (k, 0)),
                pl.BlockSpec((1, F1), lambda k: (0, 0)),
                pl.BlockSpec((F1, F2), lambda k: (0, 0)),
                pl.BlockSpec((1, F2), lambda k: (0, 0)),
            ],
            out_specs=pl.BlockSpec((N, F2), lambda k: (0, 0)),
            scratch_shapes=[pltpu.VMEM((N, F1), jnp.float32)],
        ),
        compiler_params=pltpu.CompilerParams(
            dimension_semantics=("arbitrary",)),
    )(flat, w1m, b1m, w2m, b2m)


# ---------------------- wrapper: prep + forward pass -----------------------

def _compose_conv_weights(w1, b1, w2, b2):
    """conv2(conv1(x)) with no nonlinearity between == a single 5x5 conv."""
    w1 = w1.astype(jnp.float32)
    w2 = w2.astype(jnp.float32)
    w_eff = jnp.zeros((w2.shape[0], 5, 5), jnp.float32)               # (64, 5, 5)
    for k in range(3):
        for l in range(3):
            contrib = jnp.einsum('om,mij->oij', w2[:, :, k, l], w1[:, 0])
            w_eff = w_eff.at[:, k:k + 3, l:l + 3].add(contrib)
    b_eff = b2.astype(jnp.float32) + jnp.einsum('omkl,m->o', w2,
                                                b1.astype(jnp.float32))
    return w_eff, b_eff


def _pool_ordered_patches(x_nhw, kh=5, kw=5):
    """x (N, 28, 28) -> (N, 576, 25) patches with rows ordered (dy, dx, ph, pw)."""
    N, H, W = x_nhw.shape
    Ho, Wo = H - kh + 1, W - kw + 1                                   # 24, 24
    taps = [x_nhw[:, i:i + Ho, j:j + Wo] for i in range(kh) for j in range(kw)]
    p = jnp.stack(taps, axis=-1)                                      # (N, 24, 24, 25)
    p = p.reshape(N, Ho // 2, 2, Wo // 2, 2, kh * kw)                 # (N, ph, dy, pw, dx, t)
    p = p.transpose(0, 2, 4, 1, 3, 5)                                 # (N, dy, dx, ph, pw, t)
    return p.reshape(N, Ho * Wo, kh * kw)


def prep_params(params):
    """Static, one-time weight prep (composed conv, permuted/cast fc weights)."""
    w1, b1, w2, b2, fw1, fb1, fw2, fb2 = params
    w_eff, b_eff = _compose_conv_weights(w1, b1, w2, b2)
    w_conv = jnp.transpose(w_eff.reshape(64, 25)).astype(jnp.bfloat16)   # (25, 64)
    b_conv = b_eff.reshape(1, 64).astype(jnp.float32)
    # fc1 columns permuted from PyTorch (c, h, w) flatten order to our (h, w, c)
    # pooled layout, transposed to (K, F) and pre-cast to bf16 for the MXU.
    w1m = (fw1.reshape(128, 64, 12, 12).transpose(2, 3, 1, 0)
              .reshape(9216, 128).astype(jnp.bfloat16))
    b1m = fb1.reshape(1, 128).astype(jnp.float32)
    w2m = jnp.transpose(fw2).astype(jnp.float32)                         # (128, 62)
    b2m = fb2.reshape(1, 62).astype(jnp.float32)
    return (w_conv, b_conv, w1m, b1m, w2m, b2m)


def femnist_net_forward(x_nchw, params):
    """x: (N, 1, 28, 28) f32 -> logits (N, 62) f32 (eval-mode femnistNet)."""
    # TODO(synk): train-mode dropout (p=0.25 / p=0.5) not implemented; the two
    # dropout layers are eval-mode identities here.
    w_conv, b_conv, w1m, b1m, w2m, b2m = prep_params(params)
    N = x_nchw.shape[0]
    patches = _pool_ordered_patches(x_nchw[:, 0].astype(jnp.bfloat16))   # (N, 576, 25)
    pooled = conv_pool(patches, w_conv, b_conv)                          # (N, 144, 64)
    flat = pooled.reshape(N, 144 * 64)            # free row-major reshape (no transpose)
    return fc_head(flat, w1m, b1m, w2m, b2m)                             # (N, 62)


# ---------------------- pure-JAX f32 reference (NCHW) ----------------------

def reference_forward(x_nchw, params):
    w1, b1, w2, b2, fw1, fb1, fw2, fb2 = params
    dn = ('NCHW', 'OIHW', 'NCHW')
    y = lax.conv_general_dilated(x_nchw, w1, (1, 1), 'VALID',
                                 dimension_numbers=dn) + b1[None, :, None, None]
    y = lax.conv_general_dilated(y, w2, (1, 1), 'VALID',
                                 dimension_numbers=dn) + b2[None, :, None, None]
    y = jnp.maximum(y, 0.0)
    Nb, C, H, W = y.shape
    y = y.reshape(Nb, C, H // 2, 2, W // 2, 2).max(axis=(3, 5))
    y = y.reshape(Nb, -1)
    y = y @ fw1.T + fb1
    y = y @ fw2.T + fb2
    return y                                       # raw logits (module has no softmax)


if __name__ == "__main__":
    key = jax.random.PRNGKey(0)
    ks = jax.random.split(key, 9)
    N = 2
    # fc1 expects 9216 = 64*12*12 features, which pins the input to (1, 28, 28).
    x = jax.random.normal(ks[0], (N, 1, 28, 28), jnp.float32)

    w1 = 0.10 * jax.random.normal(ks[1], (32, 1, 3, 3), jnp.float32)
    b1 = 0.10 * jax.random.normal(ks[2], (32,), jnp.float32)
    w2 = 0.05 * jax.random.normal(ks[3], (64, 32, 3, 3), jnp.float32)
    b2 = 0.05 * jax.random.normal(ks[4], (64,), jnp.float32)
    fw1 = 0.02 * jax.random.normal(ks[5], (128, 9216), jnp.float32)
    fb1 = 0.02 * jax.random.normal(ks[6], (128,), jnp.float32)
    fw2 = 0.05 * jax.random.normal(ks[7], (62, 128), jnp.float32)
    fb2 = 0.05 * jax.random.normal(ks[8], (62,), jnp.float32)
    params = (w1, b1, w2, b2, fw1, fb1, fw2, fb2)

    out = jax.jit(femnist_net_forward)(x, params)
    out = jax.block_until_ready(out)
    assert out.shape == (N, 62) and out.dtype == jnp.float32

    ref = reference_forward(x, params)
    # bf16 MXU operands (conv patches/weights, fc1 K=9216) introduce ~1e-2-scale
    # error at the logits vs the pure-f32 reference.
    max_err = float(jnp.max(jnp.abs(out - ref)))
    if not max_err < 3e-2:
        raise AssertionError(f"mismatch vs reference: max abs err {max_err}")

    print("KERNEL_OK")
</pallas_src>

<mosaic_0001>
module attributes {stable_mosaic.version = 11 : i64} {
  func.func @_conv_pool_kernel(%arg0: i32, %arg1: memref<1x576x25xbf16, #tpu.memory_space<vmem>>, %arg2: memref<25x64xbf16, #tpu.memory_space<vmem>>, %arg3: memref<1x64xf32, #tpu.memory_space<vmem>>, %arg4: memref<1x144x64xbf16, #tpu.memory_space<vmem>>) attributes {dimension_semantics = [#tpu.dimension_semantics<parallel>], iteration_bounds = array<i64: 2>, scalar_prefetch = 0 : i64, scratch_operands = 0 : i64, tpu.core_type = #tpu.core_type<tc>, window_params = [{transform_indices = @transform_0, window_bounds = array<i64: 1, 576, 25>}, {pipeline_mode = #tpu.pipeline_mode<synchronous>, transform_indices = @transform_1, window_bounds = array<i64: 25, 64>}, {pipeline_mode = #tpu.pipeline_mode<synchronous>, transform_indices = @transform_2, window_bounds = array<i64: 1, 64>}, {transform_indices = @transform_3, window_bounds = array<i64: 1, 144, 64>}]} {
    %c0 = arith.constant 0 : index
    %c0_0 = arith.constant 0 : index
    %c0_1 = arith.constant 0 : index
    %0 = vector.load %arg1[%c0, %c0_0, %c0_1] : memref<1x576x25xbf16, #tpu.memory_space<vmem>>, vector<1x576x25xbf16>
    %1 = vector.shape_cast %0 : vector<1x576x25xbf16> to vector<576x25xbf16>
    %c0_2 = arith.constant 0 : index
    %c0_3 = arith.constant 0 : index
    %2 = vector.load %arg2[%c0_2, %c0_3] : memref<25x64xbf16, #tpu.memory_space<vmem>>, vector<25x64xbf16>
    %cst = arith.constant dense<0.000000e+00> : vector<576x64xf32>
    %3 = tpu.matmul %1, %2, %cst {dimension_numbers = #tpu.dot_dimension_numbers<[1], [0], [0], [1], [0, 0, 1, 1], [], []>} : vector<576x25xbf16>, vector<25x64xbf16>, vector<576x64xf32> -> vector<576x64xf32>
    %c0_4 = arith.constant 0 : index
    %c0_5 = arith.constant 0 : index
    %4 = vector.load %arg3[%c0_4, %c0_5] : memref<1x64xf32, #tpu.memory_space<vmem>>, vector<1x64xf32>
    %5 = vector.broadcast %4 : vector<1x64xf32> to vector<576x64xf32>
    %6 = arith.addf %3, %5 : vector<576x64xf32>
    %cst_6 = arith.constant 0.000000e+00 : f32
    %7 = vector.broadcast %cst_6 : f32 to vector<576x64xf32>
    %8 = arith.maximumf %6, %7 : vector<576x64xf32>
    %9 = vector.extract_strided_slice %8 {offsets = [0, 0], sizes = [144, 64], strides = [1, 1]} : vector<576x64xf32> to vector<144x64xf32>
    %10 = vector.extract_strided_slice %8 {offsets = [144, 0], sizes = [144, 64], strides = [1, 1]} : vector<576x64xf32> to vector<144x64xf32>
    %11 = arith.maximumf %9, %10 : vector<144x64xf32>
    %12 = vector.extract_strided_slice %8 {offsets = [288, 0], sizes = [144, 64], strides = [1, 1]} : vector<576x64xf32> to vector<144x64xf32>
    %13 = vector.extract_strided_slice %8 {offsets = [432, 0], sizes = [144, 64], strides = [1, 1]} : vector<576x64xf32> to vector<144x64xf32>
    %14 = arith.maximumf %12, %13 : vector<144x64xf32>
    %15 = arith.maximumf %11, %14 : vector<144x64xf32>
    %16 = arith.truncf %15 : vector<144x64xf32> to vector<144x64xbf16>
    %c0_7 = arith.constant 0 : index
    %c0_8 = arith.constant 0 : index
    %c0_9 = arith.constant 0 : index
    %17 = vector.load %arg4[%c0_7, %c0_8, %c0_9] : memref<1x144x64xbf16, #tpu.memory_space<vmem>>, vector<1x144x64xbf16>
    %18 = vector.shape_cast %17 : vector<1x144x64xbf16> to vector<144x64xbf16>
    %19 = vector.shape_cast %16 : vector<144x64xbf16> to vector<1x144x64xbf16>
    tpu.vector_store %arg4[%c0_7, %c0_8, %c0_9], %19 {strides = array<i32>} : memref<1x144x64xbf16, #tpu.memory_space<vmem>>, vector<1x144x64xbf16>,
    return
  }
  func.func @transform_0(%arg0: i32) -> (i32, i32, i32) {
    %c0_i32 = arith.constant 0 : i32
    %c0_i32_0 = arith.constant 0 : i32
    %c0_i32_1 = arith.constant 0 : i32
    return %arg0, %c0_i32, %c0_i32_0 : i32, i32, i32
  }
  func.func @transform_1(%arg0: i32) -> (i32, i32) {
    %c0_i32 = arith.constant 0 : i32
    %c0_i32_0 = arith.constant 0 : i32
    %c0_i32_1 = arith.constant 0 : i32
    return %c0_i32, %c0_i32_0 : i32, i32
  }
  func.func @transform_2(%arg0: i32) -> (i32, i32) {
    %c0_i32 = arith.constant 0 : i32
    %c0_i32_0 = arith.constant 0 : i32
    %c0_i32_1 = arith.constant 0 : i32
    return %c0_i32, %c0_i32_0 : i32, i32
  }
  func.func @transform_3(%arg0: i32) -> (i32, i32, i32) {
    %c0_i32 = arith.constant 0 : i32
    %c0_i32_0 = arith.constant 0 : i32
    %c0_i32_1 = arith.constant 0 : i32
    return %arg0, %c0_i32, %c0_i32_0 : i32, i32, i32
  }
}

module attributes {stable_mosaic.version = 11 : i64} {
  func.func @_fc_head_kernel(%arg0: i32, %arg1: memref<2x2304xbf16, #tpu.memory_space<vmem>>, %arg2: memref<2304x128xbf16, #tpu.memory_space<vmem>>, %arg3: memref<1x128xf32, #tpu.memory_space<vmem>>, %arg4: memref<128x62xf32, #tpu.memory_space<vmem>>, %arg5: memref<1x62xf32, #tpu.memory_space<vmem>>, %arg6: memref<2x62xf32, #tpu.memory_space<vmem>>, %arg7: memref<2x128xf32, #tpu.memory_space<vmem>>) attributes {dimension_semantics = [#tpu.dimension_semantics<arbitrary>], iteration_bounds = array<i64: 4>, scalar_prefetch = 0 : i64, scratch_operands = 1 : i64, tpu.core_type = #tpu.core_type<tc>, window_params = [{transform_indices = @transform_0, window_bounds = array<i64: 2, 2304>}, {transform_indices = @transform_1, window_bounds = array<i64: 2304, 128>}, {pipeline_mode = #tpu.pipeline_mode<synchronous>, transform_indices = @transform_2, window_bounds = array<i64: 1, 128>}, {pipeline_mode = #tpu.pipeline_mode<synchronous>, transform_indices = @transform_3, window_bounds = array<i64: 128, 62>}, {pipeline_mode = #tpu.pipeline_mode<synchronous>, transform_indices = @transform_4, window_bounds = array<i64: 1, 62>}, {pipeline_mode = #tpu.pipeline_mode<synchronous>, transform_indices = @transform_5, window_bounds = array<i64: 2, 62>}]} {
    %c0_i32 = arith.constant 0 : i32
    %0 = arith.cmpi eq, %arg0, %c0_i32 : i32
    %1 = arith.extui %0 : i1 to i32
    %c0_i32_0 = arith.constant 0 : i32
    %2 = arith.cmpi ne, %1, %c0_i32_0 : i32
    scf.if %2 {
      %cst_9 = arith.constant 0.000000e+00 : f32
      %12 = vector.broadcast %cst_9 : f32 to vector<2x128xf32>
      %c0_10 = arith.constant 0 : index
      %c0_11 = arith.constant 0 : index
      %13 = vector.load %arg7[%c0_10, %c0_11] : memref<2x128xf32, #tpu.memory_space<vmem>>, vector<2x128xf32>
      tpu.vector_store %arg7[%c0_10, %c0_11], %12 {strides = array<i32>} : memref<2x128xf32, #tpu.memory_space<vmem>>, vector<2x128xf32>,
    } else {
    }
    %c0 = arith.constant 0 : index
    %c0_1 = arith.constant 0 : index
    %3 = vector.load %arg7[%c0, %c0_1] : memref<2x128xf32, #tpu.memory_space<vmem>>, vector<2x128xf32>
    %c0_2 = arith.constant 0 : index
    %c0_3 = arith.constant 0 : index
    %4 = vector.load %arg1[%c0_2, %c0_3] : memref<2x2304xbf16, #tpu.memory_space<vmem>>, vector<2x2304xbf16>
    %c0_4 = arith.constant 0 : index
    %c0_5 = arith.constant 0 : index
    %5 = vector.load %arg2[%c0_4, %c0_5] : memref<2304x128xbf16, #tpu.memory_space<vmem>>, vector<2304x128xbf16>
    %cst = arith.constant dense<0.000000e+00> : vector<2x128xf32>
    %6 = tpu.matmul %4, %5, %cst {dimension_numbers = #tpu.dot_dimension_numbers<[1], [0], [0], [1], [0, 0, 1, 1], [], []>} : vector<2x2304xbf16>, vector<2304x128xbf16>, vector<2x128xf32> -> vector<2x128xf32>
    %7 = arith.addf %3, %6 : vector<2x128xf32>
    %c0_6 = arith.constant 0 : index
    %c0_7 = arith.constant 0 : index
    %8 = vector.load %arg7[%c0_6, %c0_7] : memref<2x128xf32, #tpu.memory_space<vmem>>, vector<2x128xf32>
    tpu.vector_store %arg7[%c0_6, %c0_7], %7 {strides = array<i32>} : memref<2x128xf32, #tpu.memory_space<vmem>>, vector<2x128xf32>,
    %c3_i32 = arith.constant 3 : i32
    %9 = arith.cmpi eq, %arg0, %c3_i32 : i32
    %10 = arith.extui %9 : i1 to i32
    %c0_i32_8 = arith.constant 0 : i32
    %11 = arith.cmpi ne, %10, %c0_i32_8 : i32
    scf.if %11 {
      %c0_9 = arith.constant 0 : index
      %c0_10 = arith.constant 0 : index
      %12 = vector.load %arg7[%c0_9, %c0_10] : memref<2x128xf32, #tpu.memory_space<vmem>>, vector<2x128xf32>
      %c0_11 = arith.constant 0 : index
      %c0_12 = arith.constant 0 : index
      %13 = vector.load %arg3[%c0_11, %c0_12] : memref<1x128xf32, #tpu.memory_space<vmem>>, vector<1x128xf32>
      %14 = vector.broadcast %13 : vector<1x128xf32> to vector<2x128xf32>
      %15 = arith.addf %12, %14 : vector<2x128xf32>
      %c0_13 = arith.constant 0 : index
      %c0_14 = arith.constant 0 : index
      %16 = vector.load %arg4[%c0_13, %c0_14] : memref<128x62xf32, #tpu.memory_space<vmem>>, vector<128x62xf32>
      %cst_15 = arith.constant dense<0.000000e+00> : vector<2x62xf32>
      %17 = tpu.matmul %15, %16, %cst_15 {dimension_numbers = #tpu.dot_dimension_numbers<[1], [0], [0], [1], [0, 0, 1, 1], [], []>} : vector<2x128xf32>, vector<128x62xf32>, vector<2x62xf32> -> vector<2x62xf32>
      %c0_16 = arith.constant 0 : index
      %c0_17 = arith.constant 0 : index
      %18 = vector.load %arg5[%c0_16, %c0_17] : memref<1x62xf32, #tpu.memory_space<vmem>>, vector<1x62xf32>
      %19 = vector.broadcast %18 : vector<1x62xf32> to vector<2x62xf32>
      %20 = arith.addf %17, %19 : vector<2x62xf32>
      %c0_18 = arith.constant 0 : index
      %c0_19 = arith.constant 0 : index
      %21 = vector.load %arg6[%c0_18, %c0_19] : memref<2x62xf32, #tpu.memory_space<vmem>>, vector<2x62xf32>
      tpu.vector_store %arg6[%c0_18, %c0_19], %20 {strides = array<i32>} : memref<2x62xf32, #tpu.memory_space<vmem>>, vector<2x62xf32>,
    } else {
    }
    return
  }
  func.func @transform_0(%arg0: i32) -> (i32, i32) {
    %c0_i32 = arith.constant 0 : i32
    %c0_i32_0 = arith.constant 0 : i32
    return %c0_i32, %arg0 : i32, i32
  }
  func.func @transform_1(%arg0: i32) -> (i32, i32) {
    %c0_i32 = arith.constant 0 : i32
    %c0_i32_0 = arith.constant 0 : i32
    return %arg0, %c0_i32 : i32, i32
  }
  func.func @transform_2(%arg0: i32) -> (i32, i32) {
    %c0_i32 = arith.constant 0 : i32
    %c0_i32_0 = arith.constant 0 : i32
    %c0_i32_1 = arith.constant 0 : i32
    return %c0_i32, %c0_i32_0 : i32, i32
  }
  func.func @transform_3(%arg0: i32) -> (i32, i32) {
    %c0_i32 = arith.constant 0 : i32
    %c0_i32_0 = arith.constant 0 : i32
    %c0_i32_1 = arith.constant 0 : i32
    return %c0_i32, %c0_i32_0 : i32, i32
  }
  func.func @transform_4(%arg0: i32) -> (i32, i32) {
    %c0_i32 = arith.constant 0 : i32
    %c0_i32_0 = arith.constant 0 : i32
    %c0_i32_1 = arith.constant 0 : i32
    return %c0_i32, %c0_i32_0 : i32, i32
  }
  func.func @transform_5(%arg0: i32) -> (i32, i32) {
    %c0_i32 = arith.constant 0 : i32
    %c0_i32_0 = arith.constant 0 : i32
    %c0_i32_1 = arith.constant 0 : i32
    return %c0_i32, %c0_i32_0 : i32, i32
  }
}

</mosaic_0001>

<llo_original>
// kernel: femnist_net_forward.2
$region0: #{femnist_net_forward.2}
  #allocation0 [shape = 'u32[]', space=smem, size = 0x4, offset = 0x4, fixed_abs, tag = 'smem constant byte address 0x4 - core index']
  #allocation1 [shape = 'u32[144,128]{1,0:T(1,128)}', space=vmem, size = 0x12000, scoped, tag = 'internal scratch']
  %s0 = inlined_call_operand.vmem [shape: bf16[2,576,25], index: 0, kind: input, shape index: {}]
  %s1 = inlined_call_operand.vmem [shape: bf16[25,64], index: 1, kind: input, shape index: {}]
  %s2 = inlined_call_operand.vmem [shape: f32[1,64], index: 2, kind: input, shape index: {}]
  %s3 = inlined_call_operand.vmem [shape: bf16[2,144,64], index: 3, kind: output, shape index: {}]
  %s4 = sld [smem:[#allocation0]]
  $region45: #{femnist_net_forward.2} parent=0
    _
  %s6 = ssub.s32 1, %s4
  %s7 = scalar_select 0, %s6, %s4
  loop: start=0, step=1, limit=4
  $region2: #{femnist_net_forward.2} parent=0 // loop_pre_header
    _
  $region3: #{femnist_net_forward.2} parent=0 // loop_header
    %s9 = sphi 0, %s13
    %p10 = scmp.ge.s32.totalorder %s9, 4
    %s19 = sphi 0, %s21
    %s22 = sphi 0, %s19
    %s23 = sphi 0, %s22
    %s39 = sphi 0, %s23
    %s43 = sphi 0, %s43
    %s45 = sphi 0, %s43
    %s46 = sphi 0, %s45
    %s60 = sphi 0, %s46
    %s64 = sphi 0, %s64
    %s66 = sphi 0, %s64
    %s67 = sphi 0, %s66
    %s81 = sphi 0, %s67
    %s87 = sphi 0, %s89
    %s90 = sphi 0, %s87
    %s91 = sphi 0, %s90
    %s107 = sphi 0, %s91
  $region4: #{femnist_net_forward.2} parent=0 // loop_header_branch
    %12 = sbr.rel (%p10) target = $region8
  $region5: #{femnist_net_forward.2} parent=0 // loop_body
    %s14 = ssub.s32 %s9, 1
    %s15 = ssub.s32 %s9, 2
    %s16 = sadd.s32 %s9, 1
    %s17 = ssub.s32 %s9, %s16
    %p18 = scmp.eq.s32.totalorder %s17, 0
    %s20 = sadd.s32 %s19, 1
    %s21 = scalar_select %p18, %s19, %s20
    %p24 = pneg %p18
    %p25 = scmp.eq.s32.totalorder %s9, 1
    %p26 = por %p24, %p25
    %p27 = scmp.ne.s32.totalorder %s19, %s22
    %p28 = scmp.eq.s32.totalorder %s9, 0
    %p29 = por %p27, %p28
    %p30 = scmp.ne.s32.totalorder %s19, %s22
    %p31 = scmp.eq.s32.totalorder %s14, 1
    %p32 = por %p30, %p31
    %p33 = scmp.ne.s32.totalorder %s22, %s23
    %p34 = scmp.eq.s32.totalorder %s14, 0
    %p35 = por %p33, %p34
    %p36 = scmp.ne.s32.totalorder %s22, %s23
    %p37 = scmp.eq.s32.totalorder %s15, 1
    %p38 = por %p36, %p37
    %p40 = scmp.ne.s32.totalorder %s23, %s39
    %p41 = scmp.eq.s32.totalorder %s15, 0
    %p42 = por %p40, %p41
    %s44 = sadd.s32 %s43, 1
    %p47 = scmp.eq.s32.totalorder %s9, 1
    %p48 = scmp.ne.s32.totalorder %s43, %s45
    %p49 = scmp.eq.s32.totalorder %s9, 0
    %p50 = por %p48, %p49
    %p51 = scmp.ne.s32.totalorder %s43, %s45
    %p52 = scmp.eq.s32.totalorder %s14, 1
    %p53 = por %p51, %p52
    %p54 = scmp.ne.s32.totalorder %s45, %s46
    %p55 = scmp.eq.s32.totalorder %s14, 0
    %p56 = por %p54, %p55
    %p57 = scmp.ne.s32.totalorder %s45, %s46
    %p58 = scmp.eq.s32.totalorder %s15, 1
    %p59 = por %p57, %p58
    %p61 = scmp.ne.s32.totalorder %s46, %s60
    %p62 = scmp.eq.s32.totalorder %s15, 0
    %p63 = por %p61, %p62
    %s65 = sadd.s32 %s64, 1
    %p68 = scmp.eq.s32.totalorder %s9, 1
    %p69 = scmp.ne.s32.totalorder %s64, %s66
    %p70 = scmp.eq.s32.totalorder %s9, 0
    %p71 = por %p69, %p70
    %p72 = scmp.ne.s32.totalorder %s64, %s66
    %p73 = scmp.eq.s32.totalorder %s14, 1
    %p74 = por %p72, %p73
    %p75 = scmp.ne.s32.totalorder %s66, %s67
    %p76 = scmp.eq.s32.totalorder %s14, 0
    %p77 = por %p75, %p76
    %p78 = scmp.ne.s32.totalorder %s66, %s67
    %p79 = scmp.eq.s32.totalorder %s15, 1
    %p80 = por %p78, %p79
    %p82 = scmp.ne.s32.totalorder %s67, %s81
    %p83 = scmp.eq.s32.totalorder %s15, 0
    %p84 = por %p82, %p83
    %s85 = ssub.s32 %s9, %s16
    %p86 = scmp.eq.s32.totalorder %s85, 0
    %s88 = sadd.s32 %s87, 1
    %s89 = scalar_select %p86, %s87, %s88
    %p92 = pneg %p86
    %p93 = scmp.eq.s32.totalorder %s9, 1
    %p94 = por %p92, %p93
    %p95 = scmp.ne.s32.totalorder %s87, %s90
    %p96 = scmp.eq.s32.totalorder %s9, 0
    %p97 = por %p95, %p96
    %p98 = scmp.ne.s32.totalorder %s87, %s90
    %p99 = scmp.eq.s32.totalorder %s14, 1
    %p100 = por %p98, %p99
    %p101 = scmp.ne.s32.totalorder %s90, %s91
    %p102 = scmp.eq.s32.totalorder %s14, 0
    %p103 = por %p101, %p102
    %p104 = scmp.ne.s32.totalorder %s90, %s91
    %p105 = scmp.eq.s32.totalorder %s15, 1
    %p106 = por %p104, %p105
    %p108 = scmp.ne.s32.totalorder %s91, %s107
    %p109 = scmp.eq.s32.totalorder %s15, 0
    %p110 = por %p108, %p109
    %p111 = scmp.le.s32.totalorder 1, %s9
    %p112 = scmp.lt.s32.totalorder %s9, 3
    %p113 = pnand %p111, %p112
    %p114 = pneg %p113
    // Predicated region
    $region9: #{femnist_net_forward.2} parent=5 // pred_check
      _
    $region10: #{femnist_net_forward.2} parent=5 // pred_check_branch
      %116 = sbr.rel (%p113) target = $region12
    $region11: #{femnist_net_forward.2} parent=5 // pred_region
      %s117 = ssub.s32 %s9, 1
      // Predicated region
      $region13: #{femnist_net_forward.2} parent=11 // pred_check
        %p118 = pneg %p56
      $region14: #{femnist_net_forward.2} parent=11 // pred_check_branch
        %120 = sbr.rel (%p118) target = $region16
      $region15: #{femnist_net_forward.2} parent=11 // pred_region
        _
      $region16: #{femnist_net_forward.2} parent=11 // pred_fallthru
        _
      // Predicated region
      $region17: #{femnist_net_forward.2} parent=11 // pred_check
        %p121 = pneg %p77
      $region18: #{femnist_net_forward.2} parent=11 // pred_check_branch
        %123 = sbr.rel (%p121) target = $region20
      $region19: #{femnist_net_forward.2} parent=11 // pred_region
        _
      $region20: #{femnist_net_forward.2} parent=11 // pred_fallthru
        _
    $region12: #{femnist_net_forward.2} parent=5 // pred_fallthru
      _
    %p124 = scmp.lt.s32.totalorder %s9, 2
    // Predicated region
    $region21: #{femnist_net_forward.2} parent=5 // pred_check
      %p125 = pneg %p124
    $region22: #{femnist_net_forward.2} parent=5 // pred_check_branch
      %127 = sbr.rel (%p125) target = $region24
    $region23: #{femnist_net_forward.2} parent=5 // pred_region
      // Predicated region
      $region25: #{femnist_net_forward.2} parent=23 // pred_check
        %p128 = pneg %p29
      $region26: #{femnist_net_forward.2} parent=23 // pred_check_branch
        %130 = sbr.rel (%p128) target = $region28
      $region27: #{femnist_net_forward.2} parent=23 // pred_region
        %p131 = scmp.lt.s32.totalorder %s9, 1
        %s132 = scalar_select %p131, %s9, 1
        %s133 = smul.addr %s132, 72
        %s134 = smul.addr %s133, 4
        %s135 = scalar_lea.vmem %s0, %s134
      $region28: #{femnist_net_forward.2} parent=23 // pred_fallthru
        _
    $region24: #{femnist_net_forward.2} parent=5 // pred_fallthru
      _
    %p136 = scmp.le.s32.totalorder 1, %s9
    %p137 = scmp.lt.s32.totalorder %s9, 3
    %p138 = pnand %p136, %p137
    %p139 = pneg %p138
    // Predicated region
    $region29: #{femnist_net_forward.2} parent=5 // pred_check
      _
    $region30: #{femnist_net_forward.2} parent=5 // pred_check_branch
      %141 = sbr.rel (%p138) target = $region32
    $region31: #{femnist_net_forward.2} parent=5 // pred_region
      %s142 = ssub.s32 %s9, 1
      %p143 = scmp.lt.s32.totalorder %s14, 1
      %s144 = scalar_select %p143, %s14, 1
      %s145 = smul.addr %s144, 72
      %s146 = smul.addr %s145, 4
      %s147 = scalar_lea.vmem %s0, %s146
      %p148 = pneg %p35
      %p149 = pneg %p32
      %p150 = pneg %p56
      %p151 = pneg %p53
      %p152 = pneg %p77
      %p153 = pneg %p74
      %p154 = pneg %p103
      %p155 = pneg %p100
      %p156 = scmp.lt.s32.totalorder %s14, 1
      %s157 = scalar_select %p156, %s14, 1
      %s158 = smul.addr %s157, 18
      %s159 = smul.addr %s158, 4
      %s160 = scalar_lea.vmem %s3, %s159
      %p161 = scmp.lt.s32.totalorder %s14, 1
      %s162 = scalar_select %p161, %s14, 1
      %s163 = smul.addr %s162, 72
      %s164 = smul.addr %s163, 4
      %s165 = scalar_lea.vmem %s0, %s164
      %p166 = scmp.lt.s32.totalorder %s14, 1
      %s167 = scalar_select %p166, %s14, 1
      %s168 = smul.addr %s167, 18
      %s169 = smul.addr %s168, 4
      %s170 = scalar_lea.vmem %s3, %s169
      %v172 = vld [vmem:[%s165] sm:$0xf]
      %v173 = vld [vmem:[%s165 + $0x4] sm:$0xf]
      %v174 = vld [vmem:[%s165 + $0x8] sm:$0xf]
      %v175 = vld [vmem:[%s165 + $0xc] sm:$0xf]
      %v176 = vld [vmem:[%s165 + $0x10] sm:$0xf]
      %v177 = vld [vmem:[%s165 + $0x14] sm:$0xf]
      %v178 = vld [vmem:[%s165 + $0x18] sm:$0xf]
      %v179 = vld [vmem:[%s165 + $0x1c] sm:$0xf]
      %v180 = vld [vmem:[%s165 + $0x20] sm:$0xf]
      %v181 = vld [vmem:[%s165 + $0x24] sm:$0xf]
      %v182 = vld [vmem:[%s165 + $0x28] sm:$0xf]
      %v183 = vld [vmem:[%s165 + $0x2c] sm:$0xf]
      %v184 = vld [vmem:[%s165 + $0x30] sm:$0xf]
      %v185 = vld [vmem:[%s165 + $0x34] sm:$0xf]
      %v186 = vld [vmem:[%s165 + $0x38] sm:$0xf]
      %v187 = vld [vmem:[%s165 + $0x3c] sm:$0xf]
      %v188 = vld [vmem:[%s165 + $0x40] sm:$0xf]
      %v189 = vld [vmem:[%s165 + $0x44] sm:$0xf]
      %v190 = vld [vmem:[%s165 + $0x48] sm:$0xf]
      %v191 = vld [vmem:[%s165 + $0x4c] sm:$0xf]
      %v192 = vld [vmem:[%s165 + $0x50] sm:$0xf]
      %v193 = vld [vmem:[%s165 + $0x54] sm:$0xf]
      %v194 = vld [vmem:[%s165 + $0x58] sm:$0xf]
      %v195 = vld [vmem:[%s165 + $0x5c] sm:$0xf]
      %v196 = vld [vmem:[%s165 + $0x60] sm:$0xf]
      %v197 = vld [vmem:[%s165 + $0x64] sm:$0xf]
      %v198 = vld [vmem:[%s165 + $0x68] sm:$0xf]
      %v199 = vld [vmem:[%s165 + $0x6c] sm:$0xf]
      %v200 = vld [vmem:[%s165 + $0x70] sm:$0xf]
      %v201 = vld [vmem:[%s165 + $0x74] sm:$0xf]
      %v202 = vld [vmem:[%s165 + $0x78] sm:$0xf]
      %v203 = vld [vmem:[%s165 + $0x7c] sm:$0xf]
      %v204 = vld [vmem:[%s165 + $0x80] sm:$0xf]
      %v205 = vld [vmem:[%s165 + $0x84] sm:$0xf]
      %v206 = vld [vmem:[%s165 + $0x88] sm:$0xf]
      %v207 = vld [vmem:[%s165 + $0x8c] sm:$0xf]
      %v208 = vld [vmem:[%s165 + $0x90] sm:$0xf]
      %v209 = vld [vmem:[%s165 + $0x94] sm:$0xf]
      %v210 = vld [vmem:[%s165 + $0x98] sm:$0xf]
      %v211 = vld [vmem:[%s165 + $0x9c] sm:$0xf]
      %v212 = vld [vmem:[%s165 + $0xa0] sm:$0xf]
      %v213 = vld [vmem:[%s165 + $0xa4] sm:$0xf]
      %v214 = vld [vmem:[%s165 + $0xa8] sm:$0xf]
      %v215 = vld [vmem:[%s165 + $0xac] sm:$0xf]
      %v216 = vld [vmem:[%s165 + $0xb0] sm:$0xf]
      %v217 = vld [vmem:[%s165 + $0xb4] sm:$0xf]
      %v218 = vld [vmem:[%s165 + $0xb8] sm:$0xf]
      %v219 = vld [vmem:[%s165 + $0xbc] sm:$0xf]
      %v220 = vld [vmem:[%s165 + $0xc0] sm:$0xf]
      %v221 = vld [vmem:[%s165 + $0xc4] sm:$0xf]
      %v222 = vld [vmem:[%s165 + $0xc8] sm:$0xf]
      %v223 = vld [vmem:[%s165 + $0xcc] sm:$0xf]
      %v224 = vld [vmem:[%s165 + $0xd0] sm:$0xf]
      %v225 = vld [vmem:[%s165 + $0xd4] sm:$0xf]
      %v226 = vld [vmem:[%s165 + $0xd8] sm:$0xf]
      %v227 = vld [vmem:[%s165 + $0xdc] sm:$0xf]
      %v228 = vld [vmem:[%s165 + $0xe0] sm:$0xf]
      %v229 = vld [vmem:[%s165 + $0xe4] sm:$0xf]
      %v230 = vld [vmem:[%s165 + $0xe8] sm:$0xf]
      %v231 = vld [vmem:[%s165 + $0xec] sm:$0xf]
      %v232 = vld [vmem:[%s165 + $0xf0] sm:$0xf]
      %v233 = vld [vmem:[%s165 + $0xf4] sm:$0xf]
      %v234 = vld [vmem:[%s165 + $0xf8] sm:$0xf]
      %v235 = vld [vmem:[%s165 + $0xfc] sm:$0xf]
      %v236 = vld [vmem:[%s165 + $0x100] sm:$0xf]
      %v237 = vld [vmem:[%s165 + $0x104] sm:$0xf]
      %v238 = vld [vmem:[%s165 + $0x108] sm:$0xf]
      %v239 = vld [vmem:[%s165 + $0x10c] sm:$0xf]
      %v240 = vld [vmem:[%s165 + $0x110] sm:$0xf]
      %v241 = vld [vmem:[%s165 + $0x114] sm:$0xf]
      %v242 = vld [vmem:[%s165 + $0x118] sm:$0xf]
      %v243 = vld [vmem:[%s165 + $0x11c] sm:$0xf]
      %v244 = vld [vmem:[%s1] sm:$0xf]
      %v245 = vld [vmem:[%s1 + $0x4] sm:$0xf]
      %v246 = vld [vmem:[%s1 + $0x8] sm:$0xf]
      %v247 = vld [vmem:[%s1 + $0xc] sm:$0x1]
      %v248 = vld [vmem:[%s2] sm:$0x1]
      %v250 = vlaneseq
      %v251 = vshrl.u32 %v250, 7
      %v252 = vsub.s32 0, %v251
      %v253 = vrot.slane %v248, %v252
      %v327 = vunpack.c.l.b16 %v172
      %v328 = vunpack.c.l.b16 %v173
      %v329 = vunpack.c.l.b16 %v174
      %v330 = vunpack.c.l.b16 %v175
      %v331 = vunpack.c.l.b16 %v176
      %v332 = vunpack.c.l.b16 %v177
      %v333 = vunpack.c.l.b16 %v178
      %v334 = vunpack.c.l.b16 %v179
      %v335 = vunpack.c.l.b16 %v180
      %v336 = vunpack.c.l.b16 %v181
      %v337 = vunpack.c.l.b16 %v182
      %v338 = vunpack.c.l.b16 %v183
      %v339 = vunpack.c.l.b16 %v184
      %v340 = vunpack.c.l.b16 %v185
      %v341 = vunpack.c.l.b16 %v186
      %v342 = vunpack.c.l.b16 %v187
      %v343 = vunpack.c.l.b16 %v188
      %v344 = vunpack.c.l.b16 %v189
      %v345 = vunpack.c.l.b16 %v190
      %v346 = vunpack.c.l.b16 %v191
      %v347 = vunpack.c.l.b16 %v192
      %v348 = vunpack.c.l.b16 %v193
      %v349 = vunpack.c.l.b16 %v194
      %v350 = vunpack.c.l.b16 %v195
      %v351 = vunpack.c.l.b16 %v196
      %v352 = vunpack.c.l.b16 %v197
      %v353 = vunpack.c.l.b16 %v198
      %v354 = vunpack.c.l.b16 %v199
      %v355 = vunpack.c.l.b16 %v200
      %v356 = vunpack.c.l.b16 %v201
      %v357 = vunpack.c.l.b16 %v202
      %v358 = vunpack.c.l.b16 %v203
      %v359 = vunpack.c.l.b16 %v204
      %v360 = vunpack.c.l.b16 %v205
      %v361 = vunpack.c.l.b16 %v206
      %v362 = vunpack.c.l.b16 %v207
      %v363 = vunpack.c.l.b16 %v208
      %v364 = vunpack.c.l.b16 %v209
      %v365 = vunpack.c.l.b16 %v210
      %v366 = vunpack.c.l.b16 %v211
      %v367 = vunpack.c.l.b16 %v212
      %v368 = vunpack.c.l.b16 %v213
      %v369 = vunpack.c.l.b16 %v214
      %v370 = vunpack.c.l.b16 %v215
      %v371 = vunpack.c.l.b16 %v216
      %v372 = vunpack.c.l.b16 %v217
      %v373 = vunpack.c.l.b16 %v218
      %v374 = vunpack.c.l.b16 %v219
      %v375 = vunpack.c.l.b16 %v220
      %v376 = vunpack.c.l.b16 %v221
      %v377 = vunpack.c.l.b16 %v222
      %v378 = vunpack.c.l.b16 %v223
      %v379 = vunpack.c.l.b16 %v224
      %v380 = vunpack.c.l.b16 %v225
      %v381 = vunpack.c.l.b16 %v226
      %v382 = vunpack.c.l.b16 %v227
      %v383 = vunpack.c.l.b16 %v228
      %v384 = vunpack.c.l.b16 %v229
      %v385 = vunpack.c.l.b16 %v230
      %v386 = vunpack.c.l.b16 %v231
      %v387 = vunpack.c.l.b16 %v232
      %v388 = vunpack.c.l.b16 %v233
      %v389 = vunpack.c.l.b16 %v234
      %v390 = vunpack.c.l.b16 %v235
      %v391 = vunpack.c.l.b16 %v236
      %v392 = vunpack.c.l.b16 %v237
      %v393 = vunpack.c.l.b16 %v238
      %v394 = vunpack.c.l.b16 %v239
      %v395 = vunpack.c.l.b16 %v240
      %v396 = vunpack.c.l.b16 %v241
      %v397 = vunpack.c.l.b16 %v242
      %v398 = vunpack.c.l.b16 %v243
      %v399 = vpack.c.b16 %v328, %v327
      %v400 = vpack.c.b16 %v330, %v329
      %v401 = vpack.c.b16 %v332, %v331
      %v402 = vpack.c.b16 %v334, %v333
      %v403 = vpack.c.b16 %v336, %v335
      %v404 = vpack.c.b16 %v338, %v337
      %v405 = vpack.c.b16 %v340, %v339
      %v406 = vpack.c.b16 %v342, %v341
      %v407 = vpack.c.b16 %v344, %v343
      %v408 = vpack.c.b16 %v346, %v345
      %v409 = vpack.c.b16 %v348, %v347
      %v410 = vpack.c.b16 %v350, %v349
      %v411 = vpack.c.b16 %v352, %v351
      %v412 = vpack.c.b16 %v354, %v353
      %v413 = vpack.c.b16 %v356, %v355
      %v414 = vpack.c.b16 %v358, %v357
      %v415 = vpack.c.b16 %v360, %v359
      %v416 = vpack.c.b16 %v362, %v361
      %v417 = vpack.c.b16 %v364, %v363
      %v418 = vpack.c.b16 %v366, %v365
      %v419 = vpack.c.b16 %v368, %v367
      %v420 = vpack.c.b16 %v370, %v369
      %v421 = vpack.c.b16 %v372, %v371
      %v422 = vpack.c.b16 %v374, %v373
      %v423 = vpack.c.b16 %v376, %v375
      %v424 = vpack.c.b16 %v378, %v377
      %v425 = vpack.c.b16 %v380, %v379
      %v426 = vpack.c.b16 %v382, %v381
      %v427 = vpack.c.b16 %v384, %v383
      %v428 = vpack.c.b16 %v386, %v385
      %v429 = vpack.c.b16 %v388, %v387
      %v430 = vpack.c.b16 %v390, %v389
      %v431 = vpack.c.b16 %v392, %v391
      %v432 = vpack.c.b16 %v394, %v393
      %v433 = vpack.c.b16 %v396, %v395
      %v434 = vpack.c.b16 %v398, %v397
      %v439 = vunpack.c.l.b16 %v244
      %v440 = vunpack.c.l.b16 %v245
      %v441 = vunpack.c.l.b16 %v246
      %v442 = vunpack.c.l.b16 %v247
      %v443 = vpack.c.b16 %v440, %v439
      %v444 = vpack.c.b16 %v442, %v441
      %vm446 = vcmask 203776
      %v448 = vsel %vm446, %v399, 0
      %v451 = vsel %vm446, %v400, 0
      %v454 = vsel %vm446, %v401, 0
      %v457 = vsel %vm446, %v402, 0
      %v460 = vsel %vm446, %v403, 0
      %v463 = vsel %vm446, %v404, 0
      %v466 = vsel %vm446, %v405, 0
      %v469 = vsel %vm446, %v406, 0
      %v472 = vsel %vm446, %v407, 0
      %v475 = vsel %vm446, %v408, 0
      %v478 = vsel %vm446, %v409, 0
      %v481 = vsel %vm446, %v410, 0
      %v484 = vsel %vm446, %v411, 0
      %v487 = vsel %vm446, %v412, 0
      %v490 = vsel %vm446, %v413, 0
      %v493 = vsel %vm446, %v414, 0
      %v496 = vsel %vm446, %v415, 0
      %v499 = vsel %vm446, %v416, 0
      %v502 = vsel %vm446, %v417, 0
      %v505 = vsel %vm446, %v418, 0
      %v508 = vsel %vm446, %v419, 0
      %v511 = vsel %vm446, %v420, 0
      %v514 = vsel %vm446, %v421, 0
      %v517 = vsel %vm446, %v422, 0
      %v520 = vsel %vm446, %v423, 0
      %v523 = vsel %vm446, %v424, 0
      %v526 = vsel %vm446, %v425, 0
      %v529 = vsel %vm446, %v426, 0
      %v532 = vsel %vm446, %v427, 0
      %v535 = vsel %vm446, %v428, 0
      %v538 = vsel %vm446, %v429, 0
      %v541 = vsel %vm446, %v430, 0
      %v544 = vsel %vm446, %v431, 0
      %v547 = vsel %vm446, %v432, 0
      %v550 = vsel %vm446, %v433, 0
      %v553 = vsel %vm446, %v434, 0
      %vm555 = vcmask 1043456
      %vm556 = vcmask 1044480
      %v557 = vsel %vm555, 4294967295, 65535
      %v558 = vsel %vm556, %v557, 0
      %v560 = vand.u32 %v444, %v558
      %562 = vmatprep.subr.bf16.mxu0 0
      %563 = vmatpush1.bf16.msra.mxu0 0
      %564 = vmatprep.subr.bf16.mxu0 0
      %565 = vmatpush1.bf16.msra.mxu0 0
      %566 = vmatprep.subr.bf16.mxu0 0
      %567 = vmatpush1.bf16.msra.mxu0 0
      %568 = vmatprep.subr.bf16.mxu0 0
      %569 = vmatpush1.bf16.msra.mxu0 0
      %570 = vmatprep.subr.bf16.mxu0 0
      %571 = vmatpush1.bf16.msra.mxu0 0
      %572 = vmatprep.subr.bf16.mxu0 0
      %573 = vmatpush1.bf16.msra.mxu0 0
      %574 = vmatprep.subr.bf16.mxu0 0
      %575 = vmatpush1.bf16.msra.mxu0 %v560
      %576 = vmatprep.subr.bf16.mxu0 0
      %577 = vmatpush1.bf16.msra.mxu0 %v443
      %578 = vmatprep.subr.bf16.mxu0 0
      %579 = vmatpush2.bf16.msra.mxu0 0
      %580 = vmatprep.subr.bf16.mxu0 0
      %581 = vmatpush2.bf16.msra.mxu0 0
      %582 = vmatprep.subr.bf16.mxu0 0
      %583 = vmatpush2.bf16.msra.mxu0 0
      %584 = vmatprep.subr.bf16.mxu0 0
      %585 = vmatpush2.bf16.msra.mxu0 0
      %586 = vmatprep.subr.bf16.mxu0 0
      %587 = vmatpush2.bf16.msra.mxu0 0
      %588 = vmatprep.subr.bf16.mxu0 0
      %589 = vmatpush2.bf16.msra.mxu0 0
      %590 = vmatprep.subr.bf16.mxu0 0
      %591 = vmatpush2.bf16.msra.mxu0 0
      %592 = vmatprep.subr.bf16.mxu0 0
      %593 = vmatpush2.bf16.msra.mxu0 0
      %594 = vmatprep.mubr.bf16.mxu0 0
      %595 = vmatmul.mubr.bf16.gmra.mxu0 %v448
      %v596 = vpop.f32.mrf.mxu0
      %v597 = vadd.f32 %v253, %v596
      %v598 = vpop.f32.mrf.mxu0
      %v599 = vpop.f32.mrf.mxu0
      %v600 = vadd.f32 %v253, %v599
      %v601 = vpop.f32.mrf.mxu0
      %602 = vmatprep.mubr.bf16.mxu0 0
      %603 = vmatmul.mubr.bf16.gmra.mxu0 %v451
      %v604 = vpop.f32.mrf.mxu0
      %v605 = vadd.f32 %v253, %v604
      %v606 = vpop.f32.mrf.mxu0
      %v607 = vpop.f32.mrf.mxu0
      %v608 = vadd.f32 %v253, %v607
      %v609 = vpop.f32.mrf.mxu0
      %610 = vmatprep.mubr.bf16.mxu0 0
      %611 = vmatmul.mubr.bf16.gmra.mxu0 %v454
      %v612 = vpop.f32.mrf.mxu0
      %v613 = vadd.f32 %v253, %v612
      %v614 = vpop.f32.mrf.mxu0
      %v615 = vpop.f32.mrf.mxu0
      %v616 = vadd.f32 %v253, %v615
      %v617 = vpop.f32.mrf.mxu0
      %618 = vmatprep.mubr.bf16.mxu0 0
      %619 = vmatmul.mubr.bf16.gmra.mxu0 %v457
      %v620 = vpop.f32.mrf.mxu0
      %v621 = vadd.f32 %v253, %v620
      %v622 = vpop.f32.mrf.mxu0
      %v623 = vpop.f32.mrf.mxu0
      %v624 = vadd.f32 %v253, %v623
      %v625 = vpop.f32.mrf.mxu0
      %626 = vmatprep.mubr.bf16.mxu0 0
      %627 = vmatmul.mubr.bf16.gmra.mxu0 %v460
      %v628 = vpop.f32.mrf.mxu0
      %v629 = vadd.f32 %v253, %v628
      %v630 = vpop.f32.mrf.mxu0
      %v631 = vpop.f32.mrf.mxu0
      %v632 = vadd.f32 %v253, %v631
      %v633 = vpop.f32.mrf.mxu0
      %634 = vmatprep.mubr.bf16.mxu0 0
      %635 = vmatmul.mubr.bf16.gmra.mxu0 %v463
      %v636 = vpop.f32.mrf.mxu0
      %v637 = vadd.f32 %v253, %v636
      %v638 = vpop.f32.mrf.mxu0
      %v639 = vpop.f32.mrf.mxu0
      %v640 = vadd.f32 %v253, %v639
      %v641 = vpop.f32.mrf.mxu0
      %642 = vmatprep.mubr.bf16.mxu0 0
      %643 = vmatmul.mubr.bf16.gmra.mxu0 %v466
      %v644 = vpop.f32.mrf.mxu0
      %v645 = vadd.f32 %v253, %v644
      %v646 = vpop.f32.mrf.mxu0
      %v647 = vpop.f32.mrf.mxu0
      %v648 = vadd.f32 %v253, %v647
      %v649 = vpop.f32.mrf.mxu0
      %650 = vmatprep.mubr.bf16.mxu0 0
      %651 = vmatmul.mubr.bf16.gmra.mxu0 %v469
      %v652 = vpop.f32.mrf.mxu0
      %v653 = vadd.f32 %v253, %v652
      %v654 = vpop.f32.mrf.mxu0
      %v655 = vpop.f32.mrf.mxu0
      %v656 = vadd.f32 %v253, %v655
      %v657 = vpop.f32.mrf.mxu0
      %658 = vmatprep.mubr.bf16.mxu0 0
      %659 = vmatmul.mubr.bf16.gmra.mxu0 %v472
      %v660 = vpop.f32.mrf.mxu0
      %v661 = vadd.f32 %v253, %v660
      %v662 = vpop.f32.mrf.mxu0
      %v663 = vpop.f32.mrf.mxu0
      %v664 = vadd.f32 %v253, %v663
      %v665 = vpop.f32.mrf.mxu0
      %666 = vmatprep.mubr.bf16.mxu0 0
      %667 = vmatmul.mubr.bf16.gmra.mxu0 %v475
      %v668 = vpop.f32.mrf.mxu0
      %v669 = vadd.f32 %v253, %v668
      %v670 = vpop.f32.mrf.mxu0
      %v671 = vpop.f32.mrf.mxu0
      %v672 = vadd.f32 %v253, %v671
      %v673 = vpop.f32.mrf.mxu0
      %674 = vmatprep.mubr.bf16.mxu0 0
      %675 = vmatmul.mubr.bf16.gmra.mxu0 %v478
      %v676 = vpop.f32.mrf.mxu0
      %v677 = vadd.f32 %v253, %v676
      %v678 = vpop.f32.mrf.mxu0
      %v679 = vpop.f32.mrf.mxu0
      %v680 = vadd.f32 %v253, %v679
      %v681 = vpop.f32.mrf.mxu0
      %682 = vmatprep.mubr.bf16.mxu0 0
      %683 = vmatmul.mubr.bf16.gmra.mxu0 %v481
      %v684 = vpop.f32.mrf.mxu0
      %v685 = vadd.f32 %v253, %v684
      %v686 = vpop.f32.mrf.mxu0
      %v687 = vpop.f32.mrf.mxu0
      %v688 = vadd.f32 %v253, %v687
      %v689 = vpop.f32.mrf.mxu0
      %690 = vmatprep.mubr.bf16.mxu0 0
      %691 = vmatmul.mubr.bf16.gmra.mxu0 %v484
      %v692 = vpop.f32.mrf.mxu0
      %v693 = vadd.f32 %v253, %v692
      %v694 = vpop.f32.mrf.mxu0
      %v695 = vpop.f32.mrf.mxu0
      %v696 = vadd.f32 %v253, %v695
      %v697 = vpop.f32.mrf.mxu0
      %698 = vmatprep.mubr.bf16.mxu0 0
      %699 = vmatmul.mubr.bf16.gmra.mxu0 %v487
      %v700 = vpop.f32.mrf.mxu0
      %v701 = vadd.f32 %v253, %v700
      %v702 = vpop.f32.mrf.mxu0
      %v703 = vpop.f32.mrf.mxu0
      %v704 = vadd.f32 %v253, %v703
      %v705 = vpop.f32.mrf.mxu0
      %706 = vmatprep.mubr.bf16.mxu0 0
      %707 = vmatmul.mubr.bf16.gmra.mxu0 %v490
      %v708 = vpop.f32.mrf.mxu0
      %v709 = vadd.f32 %v253, %v708
      %v710 = vpop.f32.mrf.mxu0
      %v711 = vpop.f32.mrf.mxu0
      %v712 = vadd.f32 %v253, %v711
      %v713 = vpop.f32.mrf.mxu0
      %714 = vmatprep.mubr.bf16.mxu0 0
      %715 = vmatmul.mubr.bf16.gmra.mxu0 %v493
      %v716 = vpop.f32.mrf.mxu0
      %v717 = vadd.f32 %v253, %v716
      %v718 = vpop.f32.mrf.mxu0
      %v719 = vpop.f32.mrf.mxu0
      %v720 = vadd.f32 %v253, %v719
      %v721 = vpop.f32.mrf.mxu0
      %722 = vmatprep.mubr.bf16.mxu0 0
      %723 = vmatmul.mubr.bf16.gmra.mxu0 %v496
      %v724 = vpop.f32.mrf.mxu0
      %v725 = vadd.f32 %v253, %v724
      %v726 = vpop.f32.mrf.mxu0
      %v727 = vpop.f32.mrf.mxu0
      %v728 = vadd.f32 %v253, %v727
      %v729 = vpop.f32.mrf.mxu0
      %730 = vmatprep.mubr.bf16.mxu0 0
      %731 = vmatmul.mubr.bf16.gmra.mxu0 %v499
      %v732 = vpop.f32.mrf.mxu0
      %v733 = vadd.f32 %v253, %v732
      %v734 = vpop.f32.mrf.mxu0
      %v735 = vpop.f32.mrf.mxu0
      %v736 = vadd.f32 %v253, %v735
      %v737 = vpop.f32.mrf.mxu0
      %738 = vmatprep.mubr.bf16.mxu0 0
      %739 = vmatmul.mubr.bf16.gmra.mxu0 %v502
      %v740 = vpop.f32.mrf.mxu0
      %v741 = vadd.f32 %v253, %v740
      %v742 = vpop.f32.mrf.mxu0
      %v743 = vpop.f32.mrf.mxu0
      %v744 = vadd.f32 %v253, %v743
      %v745 = vpop.f32.mrf.mxu0
      %746 = vmatprep.mubr.bf16.mxu0 0
      %747 = vmatmul.mubr.bf16.gmra.mxu0 %v505
      %v748 = vpop.f32.mrf.mxu0
      %v749 = vadd.f32 %v253, %v748
      %v750 = vpop.f32.mrf.mxu0
      %v751 = vpop.f32.mrf.mxu0
      %v752 = vadd.f32 %v253, %v751
      %v753 = vpop.f32.mrf.mxu0
      %754 = vmatprep.mubr.bf16.mxu0 0
      %755 = vmatmul.mubr.bf16.gmra.mxu0 %v508
      %v756 = vpop.f32.mrf.mxu0
      %v757 = vadd.f32 %v253, %v756
      %v758 = vpop.f32.mrf.mxu0
      %v759 = vpop.f32.mrf.mxu0
      %v760 = vadd.f32 %v253, %v759
      %v761 = vpop.f32.mrf.mxu0
      %762 = vmatprep.mubr.bf16.mxu0 0
      %763 = vmatmul.mubr.bf16.gmra.mxu0 %v511
      %v764 = vpop.f32.mrf.mxu0
      %v765 = vadd.f32 %v253, %v764
      %v766 = vpop.f32.mrf.mxu0
      %v767 = vpop.f32.mrf.mxu0
      %v768 = vadd.f32 %v253, %v767
      %v769 = vpop.f32.mrf.mxu0
      %770 = vmatprep.mubr.bf16.mxu0 0
      %771 = vmatmul.mubr.bf16.gmra.mxu0 %v514
      %v772 = vpop.f32.mrf.mxu0
      %v773 = vadd.f32 %v253, %v772
      %v774 = vpop.f32.mrf.mxu0
      %v775 = vpop.f32.mrf.mxu0
      %v776 = vadd.f32 %v253, %v775
      %v777 = vpop.f32.mrf.mxu0
      %778 = vmatprep.mubr.bf16.mxu0 0
      %779 = vmatmul.mubr.bf16.gmra.mxu0 %v517
      %v780 = vpop.f32.mrf.mxu0
      %v781 = vadd.f32 %v253, %v780
      %v782 = vpop.f32.mrf.mxu0
      %v783 = vpop.f32.mrf.mxu0
      %v784 = vadd.f32 %v253, %v783
      %v785 = vpop.f32.mrf.mxu0
      %786 = vmatprep.mubr.bf16.mxu0 0
      %787 = vmatmul.mubr.bf16.gmra.mxu0 %v520
      %v788 = vpop.f32.mrf.mxu0
      %v789 = vadd.f32 %v253, %v788
      %v790 = vpop.f32.mrf.mxu0
      %v791 = vpop.f32.mrf.mxu0
      %v792 = vadd.f32 %v253, %v791
      %v793 = vpop.f32.mrf.mxu0
      %794 = vmatprep.mubr.bf16.mxu0 0
      %795 = vmatmul.mubr.bf16.gmra.mxu0 %v523
      %v796 = vpop.f32.mrf.mxu0
      %v797 = vadd.f32 %v253, %v796
      %v798 = vpop.f32.mrf.mxu0
      %v799 = vpop.f32.mrf.mxu0
      %v800 = vadd.f32 %v253, %v799
      %v801 = vpop.f32.mrf.mxu0
      %802 = vmatprep.mubr.bf16.mxu0 0
      %803 = vmatmul.mubr.bf16.gmra.mxu0 %v526
      %v804 = vpop.f32.mrf.mxu0
      %v805 = vadd.f32 %v253, %v804
      %v806 = vpop.f32.mrf.mxu0
      %v807 = vpop.f32.mrf.mxu0
      %v808 = vadd.f32 %v253, %v807
      %v809 = vpop.f32.mrf.mxu0
      %810 = vmatprep.mubr.bf16.mxu0 0
      %811 = vmatmul.mubr.bf16.gmra.mxu0 %v529
      %v812 = vpop.f32.mrf.mxu0
      %v813 = vadd.f32 %v253, %v812
      %v814 = vpop.f32.mrf.mxu0
      %v815 = vpop.f32.mrf.mxu0
      %v816 = vadd.f32 %v253, %v815
      %v817 = vpop.f32.mrf.mxu0
      %818 = vmatprep.mubr.bf16.mxu0 0
      %819 = vmatmul.mubr.bf16.gmra.mxu0 %v532
      %v820 = vpop.f32.mrf.mxu0
      %v821 = vadd.f32 %v253, %v820
      %v822 = vpop.f32.mrf.mxu0
      %v823 = vpop.f32.mrf.mxu0
      %v824 = vadd.f32 %v253, %v823
      %v825 = vpop.f32.mrf.mxu0
      %826 = vmatprep.mubr.bf16.mxu0 0
      %827 = vmatmul.mubr.bf16.gmra.mxu0 %v535
      %v828 = vpop.f32.mrf.mxu0
      %v829 = vadd.f32 %v253, %v828
      %v830 = vpop.f32.mrf.mxu0
      %v831 = vpop.f32.mrf.mxu0
      %v832 = vadd.f32 %v253, %v831
      %v833 = vpop.f32.mrf.mxu0
      %834 = vmatprep.mubr.bf16.mxu0 0
      %835 = vmatmul.mubr.bf16.gmra.mxu0 %v538
      %v836 = vpop.f32.mrf.mxu0
      %v837 = vadd.f32 %v253, %v836
      %v838 = vpop.f32.mrf.mxu0
      %v839 = vpop.f32.mrf.mxu0
      %v840 = vadd.f32 %v253, %v839
      %v841 = vpop.f32.mrf.mxu0
      %842 = vmatprep.mubr.bf16.mxu0 0
      %843 = vmatmul.mubr.bf16.gmra.mxu0 %v541
      %v844 = vpop.f32.mrf.mxu0
      %v845 = vadd.f32 %v253, %v844
      %v846 = vpop.f32.mrf.mxu0
      %v847 = vpop.f32.mrf.mxu0
      %v848 = vadd.f32 %v253, %v847
      %v849 = vpop.f32.mrf.mxu0
      %850 = vmatprep.mubr.bf16.mxu0 0
      %851 = vmatmul.mubr.bf16.gmra.mxu0 %v544
      %v852 = vpop.f32.mrf.mxu0
      %v853 = vadd.f32 %v253, %v852
      %v854 = vpop.f32.mrf.mxu0
      %v855 = vpop.f32.mrf.mxu0
      %v856 = vadd.f32 %v253, %v855
      %v857 = vpop.f32.mrf.mxu0
      %858 = vmatprep.mubr.bf16.mxu0 0
      %859 = vmatmul.mubr.bf16.gmra.mxu0 %v547
      %v860 = vpop.f32.mrf.mxu0
      %v861 = vadd.f32 %v253, %v860
      %v862 = vpop.f32.mrf.mxu0
      %v863 = vpop.f32.mrf.mxu0
      %v864 = vadd.f32 %v253, %v863
      %v865 = vpop.f32.mrf.mxu0
      %866 = vmatprep.mubr.bf16.mxu0 0
      %867 = vmatmul.mubr.bf16.gmra.mxu0 %v550
      %v868 = vpop.f32.mrf.mxu0
      %v869 = vadd.f32 %v253, %v868
      %v870 = vpop.f32.mrf.mxu0
      %v871 = vpop.f32.mrf.mxu0
      %v872 = vadd.f32 %v253, %v871
      %v873 = vpop.f32.mrf.mxu0
      %874 = vmatprep.mubr.bf16.mxu0 0
      %875 = vmatmul.mubr.bf16.gmra.mxu0 %v553
      %v876 = vpop.f32.mrf.mxu0
      %v877 = vadd.f32 %v253, %v876
      %v878 = vpop.f32.mrf.mxu0
      %v879 = vpop.f32.mrf.mxu0
      %v880 = vadd.f32 %v253, %v879
      %v881 = vpop.f32.mrf.mxu0
      %882 = vdwg.mxu0
      %v883 = vmax.f32 %v597, 0.0
      %v884 = vmax.f32 %v600, 0.0
      %v885 = vmax.f32 %v605, 0.0
      %v886 = vmax.f32 %v608, 0.0
      %v887 = vmax.f32 %v613, 0.0
      %v888 = vmax.f32 %v616, 0.0
      %v889 = vmax.f32 %v621, 0.0
      %v890 = vmax.f32 %v624, 0.0
      %v891 = vmax.f32 %v629, 0.0
      %v892 = vmax.f32 %v632, 0.0
      %v893 = vmax.f32 %v637, 0.0
      %v894 = vmax.f32 %v640, 0.0
      %v895 = vmax.f32 %v645, 0.0
      %v896 = vmax.f32 %v648, 0.0
      %v897 = vmax.f32 %v653, 0.0
      %v898 = vmax.f32 %v656, 0.0
      %v899 = vmax.f32 %v661, 0.0
      %v900 = vmax.f32 %v664, 0.0
      %v901 = vmax.f32 %v669, 0.0
      %v902 = vmax.f32 %v672, 0.0
      %v903 = vmax.f32 %v677, 0.0
      %v904 = vmax.f32 %v680, 0.0
      %v905 = vmax.f32 %v685, 0.0
      %v906 = vmax.f32 %v688, 0.0
      %v907 = vmax.f32 %v693, 0.0
      %v908 = vmax.f32 %v696, 0.0
      %v909 = vmax.f32 %v701, 0.0
      %v910 = vmax.f32 %v704, 0.0
      %v911 = vmax.f32 %v709, 0.0
      %v912 = vmax.f32 %v712, 0.0
      %v913 = vmax.f32 %v717, 0.0
      %v914 = vmax.f32 %v720, 0.0
      %v915 = vmax.f32 %v725, 0.0
      %v916 = vmax.f32 %v728, 0.0
      %v917 = vmax.f32 %v733, 0.0
      %v918 = vmax.f32 %v736, 0.0
      %v919 = vmax.f32 %v741, 0.0
      %v920 = vmax.f32 %v744, 0.0
      %v921 = vmax.f32 %v749, 0.0
      %v922 = vmax.f32 %v752, 0.0
      %v923 = vmax.f32 %v757, 0.0
      %v924 = vmax.f32 %v760, 0.0
      %v925 = vmax.f32 %v765, 0.0
      %v926 = vmax.f32 %v768, 0.0
      %v927 = vmax.f32 %v773, 0.0
      %v928 = vmax.f32 %v776, 0.0
      %v929 = vmax.f32 %v781, 0.0
      %v930 = vmax.f32 %v784, 0.0
      %v931 = vmax.f32 %v789, 0.0
      %v932 = vmax.f32 %v792, 0.0
      %v933 = vmax.f32 %v797, 0.0
      %v934 = vmax.f32 %v800, 0.0
      %v935 = vmax.f32 %v805, 0.0
      %v936 = vmax.f32 %v808, 0.0
      %v937 = vmax.f32 %v813, 0.0
      %v938 = vmax.f32 %v816, 0.0
      %v939 = vmax.f32 %v821, 0.0
      %v940 = vmax.f32 %v824, 0.0
      %v941 = vmax.f32 %v829, 0.0
      %v942 = vmax.f32 %v832, 0.0
      %v943 = vmax.f32 %v837, 0.0
      %v944 = vmax.f32 %v840, 0.0
      %v945 = vmax.f32 %v845, 0.0
      %v946 = vmax.f32 %v848, 0.0
      %v947 = vmax.f32 %v853, 0.0
      %v948 = vmax.f32 %v856, 0.0
      %v949 = vmax.f32 %v861, 0.0
      %v950 = vmax.f32 %v864, 0.0
      %v951 = vmax.f32 %v869, 0.0
      %v952 = vmax.f32 %v872, 0.0
      %v953 = vmax.f32 %v877, 0.0
      %v954 = vmax.f32 %v880, 0.0
      %v955 = vmax.f32 %v883, %v901
      %v956 = vmax.f32 %v884, %v902
      %v957 = vmax.f32 %v885, %v903
      %v958 = vmax.f32 %v886, %v904
      %v959 = vmax.f32 %v887, %v905
      %v960 = vmax.f32 %v888, %v906
      %v961 = vmax.f32 %v889, %v907
      %v962 = vmax.f32 %v890, %v908
      %v963 = vmax.f32 %v891, %v909
      %v964 = vmax.f32 %v892, %v910
      %v965 = vmax.f32 %v893, %v911
      %v966 = vmax.f32 %v894, %v912
      %v967 = vmax.f32 %v895, %v913
      %v968 = vmax.f32 %v896, %v914
      %v969 = vmax.f32 %v897, %v915
      %v970 = vmax.f32 %v898, %v916
      %v971 = vmax.f32 %v899, %v917
      %v972 = vmax.f32 %v900, %v918
      %v973 = vmax.f32 %v919, %v937
      %v974 = vmax.f32 %v920, %v938
      %v975 = vmax.f32 %v921, %v939
      %v976 = vmax.f32 %v922, %v940
      %v977 = vmax.f32 %v923, %v941
      %v978 = vmax.f32 %v924, %v942
      %v979 = vmax.f32 %v925, %v943
      %v980 = vmax.f32 %v926, %v944
      %v981 = vmax.f32 %v927, %v945
      %v982 = vmax.f32 %v928, %v946
      %v983 = vmax.f32 %v929, %v947
      %v984 = vmax.f32 %v930, %v948
      %v985 = vmax.f32 %v931, %v949
      %v986 = vmax.f32 %v932, %v950
      %v987 = vmax.f32 %v933, %v951
      %v988 = vmax.f32 %v934, %v952
      %v989 = vmax.f32 %v935, %v953
      %v990 = vmax.f32 %v936, %v954
      %v991 = vmax.f32 %v955, %v973
      %v992 = vmax.f32 %v956, %v974
      %v993 = vmax.f32 %v957, %v975
      %v994 = vmax.f32 %v958, %v976
      %v995 = vmax.f32 %v959, %v977
      %v996 = vmax.f32 %v960, %v978
      %v997 = vmax.f32 %v961, %v979
      %v998 = vmax.f32 %v962, %v980
      %v999 = vmax.f32 %v963, %v981
      %v1000 = vmax.f32 %v964, %v982
      %v1001 = vmax.f32 %v965, %v983
      %v1002 = vmax.f32 %v966, %v984
      %v1003 = vmax.f32 %v967, %v985
      %v1004 = vmax.f32 %v968, %v986
      %v1005 = vmax.f32 %v969, %v987
      %v1006 = vmax.f32 %v970, %v988
      %v1007 = vmax.f32 %v971, %v989
      %v1008 = vmax.f32 %v972, %v990
      %v1009 = vpack.c.bf16 %v992, %v991
      %v1010 = vpack.c.bf16 %v994, %v993
      %v1011 = vpack.c.bf16 %v996, %v995
      %v1012 = vpack.c.bf16 %v998, %v997
      %v1013 = vpack.c.bf16 %v1000, %v999
      %v1014 = vpack.c.bf16 %v1002, %v1001
      %v1015 = vpack.c.bf16 %v1004, %v1003
      %v1016 = vpack.c.bf16 %v1006, %v1005
      %v1017 = vpack.c.bf16 %v1008, %v1007
      %v1027 = vunpack.c.l.b16 %v1009
      %v1028 = vunpack.c.h.b16 %v1009
      %v1029 = vunpack.c.l.b16 %v1010
      %v1030 = vunpack.c.h.b16 %v1010
      %v1031 = vunpack.c.l.b16 %v1011
      %v1032 = vunpack.c.h.b16 %v1011
      %v1033 = vunpack.c.l.b16 %v1012
      %v1034 = vunpack.c.h.b16 %v1012
      %v1035 = vunpack.c.l.b16 %v1013
      %v1036 = vunpack.c.h.b16 %v1013
      %v1037 = vunpack.c.l.b16 %v1014
      %v1038 = vunpack.c.h.b16 %v1014
      %v1039 = vunpack.c.l.b16 %v1015
      %v1040 = vunpack.c.h.b16 %v1015
      %v1041 = vunpack.c.l.b16 %v1016
      %v1042 = vunpack.c.h.b16 %v1016
      %v1043 = vunpack.c.l.b16 %v1017
      %v1044 = vunpack.c.h.b16 %v1017
      %v1045 = vpack.c.b16 %v1027, %v1027
      %v1046 = vpack.c.b16 %v1028, %v1028
      %v1047 = vpack.c.b16 %v1029, %v1029
      %v1048 = vpack.c.b16 %v1030, %v1030
      %v1049 = vpack.c.b16 %v1031, %v1031
      %v1050 = vpack.c.b16 %v1032, %v1032
      %v1051 = vpack.c.b16 %v1033, %v1033
      %v1052 = vpack.c.b16 %v1034, %v1034
      %v1053 = vpack.c.b16 %v1035, %v1035
      %v1054 = vpack.c.b16 %v1036, %v1036
      %v1055 = vpack.c.b16 %v1037, %v1037
      %v1056 = vpack.c.b16 %v1038, %v1038
      %v1057 = vpack.c.b16 %v1039, %v1039
      %v1058 = vpack.c.b16 %v1040, %v1040
      %v1059 = vpack.c.b16 %v1041, %v1041
      %v1060 = vpack.c.b16 %v1042, %v1042
      %v1061 = vpack.c.b16 %v1043, %v1043
      %v1062 = vpack.c.b16 %v1044, %v1044
      %vm1081 = vcmask 519168
      %1082 = vst.msk [vmem:[%s170] sm:$0xf] %vm1081, %v1045
      %1083 = vst.msk [vmem:[%s170 + $0x4] sm:$0xf] %vm1081, %v1046
      %1084 = vst.msk [vmem:[%s170 + $0x8] sm:$0xf] %vm1081, %v1047
      %1085 = vst.msk [vmem:[%s170 + $0xc] sm:$0xf] %vm1081, %v1048
      %1086 = vst.msk [vmem:[%s170 + $0x10] sm:$0xf] %vm1081, %v1049
      %1087 = vst.msk [vmem:[%s170 + $0x14] sm:$0xf] %vm1081, %v1050
      %1088 = vst.msk [vmem:[%s170 + $0x18] sm:$0xf] %vm1081, %v1051
      %1089 = vst.msk [vmem:[%s170 + $0x1c] sm:$0xf] %vm1081, %v1052
      %1090 = vst.msk [vmem:[%s170 + $0x20] sm:$0xf] %vm1081, %v1053
      %1091 = vst.msk [vmem:[%s170 + $0x24] sm:$0xf] %vm1081, %v1054
      %1092 = vst.msk [vmem:[%s170 + $0x28] sm:$0xf] %vm1081, %v1055
      %1093 = vst.msk [vmem:[%s170 + $0x2c] sm:$0xf] %vm1081, %v1056
      %1094 = vst.msk [vmem:[%s170 + $0x30] sm:$0xf] %vm1081, %v1057
      %1095 = vst.msk [vmem:[%s170 + $0x34] sm:$0xf] %vm1081, %v1058
      %1096 = vst.msk [vmem:[%s170 + $0x38] sm:$0xf] %vm1081, %v1059
      %1097 = vst.msk [vmem:[%s170 + $0x3c] sm:$0xf] %vm1081, %v1060
      %1098 = vst.msk [vmem:[%s170 + $0x40] sm:$0xf] %vm1081, %v1061
      %1099 = vst.msk [vmem:[%s170 + $0x44] sm:$0xf] %vm1081, %v1062
      %p1100 = scmp.lt.s32.totalorder %s14, 1
      %s1101 = scalar_select %p1100, %s14, 1
      %s1102 = smul.addr %s1101, 18
      %s1103 = smul.addr %s1102, 4
      %s1104 = scalar_lea.vmem %s3, %s1103
      // Predicated region
      $region33: #{femnist_net_forward.2} parent=31 // pred_check
        %p1105 = pneg %p100
      $region34: #{femnist_net_forward.2} parent=31 // pred_check_branch
        %1107 = sbr.rel (%p1105) target = $region36
      $region35: #{femnist_net_forward.2} parent=31 // pred_region
        _
      $region36: #{femnist_net_forward.2} parent=31 // pred_fallthru
        _
    $region32: #{femnist_net_forward.2} parent=5 // pred_fallthru
      _
    %p1108 = scmp.le.s32.totalorder 2, %s9
    // Predicated region
    $region37: #{femnist_net_forward.2} parent=5 // pred_check
      %p1109 = pneg %p1108
    $region38: #{femnist_net_forward.2} parent=5 // pred_check_branch
      %1111 = sbr.rel (%p1109) target = $region40
    $region39: #{femnist_net_forward.2} parent=5 // pred_region
      %s1112 = ssub.s32 %s9, 2
      // Predicated region
      $region41: #{femnist_net_forward.2} parent=39 // pred_check
        %p1113 = pneg %p106
      $region42: #{femnist_net_forward.2} parent=39 // pred_check_branch
        %1115 = sbr.rel (%p1113) target = $region44
      $region43: #{femnist_net_forward.2} parent=39 // pred_region
        %p1116 = scmp.lt.s32.totalorder %s15, 1
        %s1117 = scalar_select %p1116, %s15, 1
        %s1118 = smul.addr %s1117, 18
        %s1119 = smul.addr %s1118, 4
        %s1120 = scalar_lea.vmem %s3, %s1119
      $region44: #{femnist_net_forward.2} parent=39 // pred_fallthru
        _
    $region40: #{femnist_net_forward.2} parent=5 // pred_fallthru
      _
  $region6: #{femnist_net_forward.2} parent=0 // loop_footer
    %s13 = sadd.s32 1, %s9
  $region7: #{femnist_net_forward.2} parent=0 // loop_footer_branch
    %8 = sbr.rel target = $region3
  $region8: #{femnist_net_forward.2} parent=0 // loop_exit
    _

// kernel: femnist_net_forward.3
$region0: #{femnist_net_forward.3}
  #allocation0 [shape = 'u32[]', space=smem, size = 0x4, offset = 0x4, fixed_abs, tag = 'smem constant byte address 0x4 - core index']
  #allocation1 [shape = 'u32[144,128]{1,0:T(1,128)}', space=vmem, size = 0x12000, scoped, tag = 'internal scratch']
  #allocation2 [shape = 'f32[2,128]{1,0:T(2,128)}', space=vmem, size = 0x400, scoped, tag = 'scratch operand']
  %s0 = inlined_call_operand.vmem [shape: bf16[2,9216], index: 0, kind: input, shape index: {}]
  %s1 = inlined_call_operand.vmem [shape: bf16[9216,128], index: 1, kind: input, shape index: {}]
  %s2 = inlined_call_operand.vmem [shape: f32[1,128], index: 2, kind: input, shape index: {}]
  %s3 = inlined_call_operand.vmem [shape: f32[128,62], index: 3, kind: input, shape index: {}]
  %s4 = inlined_call_operand.vmem [shape: f32[1,62], index: 4, kind: input, shape index: {}]
  %s5 = inlined_call_operand.hbm [shape: f32[2,62], index: 5, kind: output, shape index: {}]
  %s6 = sld [smem:[#allocation0]]
  $region61: #{femnist_net_forward.3} parent=0
    _
  %s8 = ssub.s32 1, %s6
  %s9 = scalar_select 0, %s8, %s6
  $region1: #{femnist_net_forward.3} parent=0
    #allocation3 [shape = 'u8[1024]{0}', space=vmem, size = 0x400, scoped, tag = 'output window, operand 0, single buffered']
    #allocation4 [shape = 's32[2]{0}', space=sflag, size = 0x8, scoped, tag = 'scoped memory for femnist_net_forward.3']
    %10 = vsyncpa [#allocation4], 0
    loop: start=0, step=1, limit=6
    $region2: #{femnist_net_forward.3} parent=1 // loop_pre_header
      _
    $region3: #{femnist_net_forward.3} parent=1 // loop_header
      %s12 = sphi 0, %s16
      %p13 = scmp.ge.s32.totalorder %s12, 6
      %s22 = sphi 0, %s24
      %s25 = sphi 0, %s22
      %s26 = sphi 0, %s25
      %s42 = sphi 0, %s26
      %s48 = sphi 0, %s50
      %s51 = sphi 0, %s48
      %s52 = sphi 0, %s51
      %s68 = sphi 0, %s52
      %s72 = sphi 0, %s72
      %s74 = sphi 0, %s72
      %s75 = sphi 0, %s74
      %s89 = sphi 0, %s75
      %s93 = sphi 0, %s93
      %s95 = sphi 0, %s93
      %s96 = sphi 0, %s95
      %s110 = sphi 0, %s96
      %s114 = sphi 0, %s114
      %s116 = sphi 0, %s114
      %s117 = sphi 0, %s116
      %s131 = sphi 0, %s117
      %s135 = sphi 0, %s135
      %s137 = sphi 0, %s135
      %s138 = sphi 0, %s137
      %s152 = sphi 0, %s138
    $region4: #{femnist_net_forward.3} parent=1 // loop_header_branch
      %15 = sbr.rel (%p13) target = $region8
    $region5: #{femnist_net_forward.3} parent=1 // loop_body
      %s17 = ssub.s32 %s12, 1
      %s18 = ssub.s32 %s12, 2
      %s19 = sadd.s32 %s12, 1
      %s20 = ssub.s32 %s12, %s19
      %p21 = scmp.eq.s32.totalorder %s20, 0
      %s23 = sadd.s32 %s22, 1
      %s24 = scalar_select %p21, %s22, %s23
      %p27 = pneg %p21
      %p28 = scmp.eq.s32.totalorder %s12, 3
      %p29 = por %p27, %p28
      %p30 = scmp.ne.s32.totalorder %s22, %s25
      %p31 = scmp.eq.s32.totalorder %s12, 0
      %p32 = por %p30, %p31
      %p33 = scmp.ne.s32.totalorder %s22, %s25
      %p34 = scmp.eq.s32.totalorder %s17, 3
      %p35 = por %p33, %p34
      %p36 = scmp.ne.s32.totalorder %s25, %s26
      %p37 = scmp.eq.s32.totalorder %s17, 0
      %p38 = por %p36, %p37
      %p39 = scmp.ne.s32.totalorder %s25, %s26
      %p40 = scmp.eq.s32.totalorder %s18, 3
      %p41 = por %p39, %p40
      %p43 = scmp.ne.s32.totalorder %s26, %s42
      %p44 = scmp.eq.s32.totalorder %s18, 0
      %p45 = por %p43, %p44
      %s46 = ssub.s32 %s12, %s19
      %p47 = scmp.eq.s32.totalorder %s46, 0
      %s49 = sadd.s32 %s48, 1
      %s50 = scalar_select %p47, %s48, %s49
      %p53 = pneg %p47
      %p54 = scmp.eq.s32.totalorder %s12, 3
      %p55 = por %p53, %p54
      %p56 = scmp.ne.s32.totalorder %s48, %s51
      %p57 = scmp.eq.s32.totalorder %s12, 0
      %p58 = por %p56, %p57
      %p59 = scmp.ne.s32.totalorder %s48, %s51
      %p60 = scmp.eq.s32.totalorder %s17, 3
      %p61 = por %p59, %p60
      %p62 = scmp.ne.s32.totalorder %s51, %s52
      %p63 = scmp.eq.s32.totalorder %s17, 0
      %p64 = por %p62, %p63
      %p65 = scmp.ne.s32.totalorder %s51, %s52
      %p66 = scmp.eq.s32.totalorder %s18, 3
      %p67 = por %p65, %p66
      %p69 = scmp.ne.s32.totalorder %s52, %s68
      %p70 = scmp.eq.s32.totalorder %s18, 0
      %p71 = por %p69, %p70
      %s73 = sadd.s32 %s72, 1
      %p76 = scmp.eq.s32.totalorder %s12, 3
      %p77 = scmp.ne.s32.totalorder %s72, %s74
      %p78 = scmp.eq.s32.totalorder %s12, 0
      %p79 = por %p77, %p78
      %p80 = scmp.ne.s32.totalorder %s72, %s74
      %p81 = scmp.eq.s32.totalorder %s17, 3
      %p82 = por %p80, %p81
      %p83 = scmp.ne.s32.totalorder %s74, %s75
      %p84 = scmp.eq.s32.totalorder %s17, 0
      %p85 = por %p83, %p84
      %p86 = scmp.ne.s32.totalorder %s74, %s75
      %p87 = scmp.eq.s32.totalorder %s18, 3
      %p88 = por %p86, %p87
      %p90 = scmp.ne.s32.totalorder %s75, %s89
      %p91 = scmp.eq.s32.totalorder %s18, 0
      %p92 = por %p90, %p91
      %s94 = sadd.s32 %s93, 1
      %p97 = scmp.eq.s32.totalorder %s12, 3
      %p98 = scmp.ne.s32.totalorder %s93, %s95
      %p99 = scmp.eq.s32.totalorder %s12, 0
      %p100 = por %p98, %p99
      %p101 = scmp.ne.s32.totalorder %s93, %s95
      %p102 = scmp.eq.s32.totalorder %s17, 3
      %p103 = por %p101, %p102
      %p104 = scmp.ne.s32.totalorder %s95, %s96
      %p105 = scmp.eq.s32.totalorder %s17, 0
      %p106 = por %p104, %p105
      %p107 = scmp.ne.s32.totalorder %s95, %s96
      %p108 = scmp.eq.s32.totalorder %s18, 3
      %p109 = por %p107, %p108
      %p111 = scmp.ne.s32.totalorder %s96, %s110
      %p112 = scmp.eq.s32.totalorder %s18, 0
      %p113 = por %p111, %p112
      %s115 = sadd.s32 %s114, 1
      %p118 = scmp.eq.s32.totalorder %s12, 3
      %p119 = scmp.ne.s32.totalorder %s114, %s116
      %p120 = scmp.eq.s32.totalorder %s12, 0
      %p121 = por %p119, %p120
      %p122 = scmp.ne.s32.totalorder %s114, %s116
      %p123 = scmp.eq.s32.totalorder %s17, 3
      %p124 = por %p122, %p123
      %p125 = scmp.ne.s32.totalorder %s116, %s117
      %p126 = scmp.eq.s32.totalorder %s17, 0
      %p127 = por %p125, %p126
      %p128 = scmp.ne.s32.totalorder %s116, %s117
      %p129 = scmp.eq.s32.totalorder %s18, 3
      %p130 = por %p128, %p129
      %p132 = scmp.ne.s32.totalorder %s117, %s131
      %p133 = scmp.eq.s32.totalorder %s18, 0
      %p134 = por %p132, %p133
      %s136 = sadd.s32 %s135, 1
      %p139 = scmp.eq.s32.totalorder %s12, 3
      %p140 = scmp.ne.s32.totalorder %s135, %s137
      %p141 = scmp.eq.s32.totalorder %s12, 0
      %p142 = por %p140, %p141
      %p143 = scmp.ne.s32.totalorder %s135, %s137
      %p144 = scmp.eq.s32.totalorder %s17, 3
      %p145 = por %p143, %p144
      %p146 = scmp.ne.s32.totalorder %s137, %s138
      %p147 = scmp.eq.s32.totalorder %s17, 0
      %p148 = por %p146, %p147
      %p149 = scmp.ne.s32.totalorder %s137, %s138
      %p150 = scmp.eq.s32.totalorder %s18, 3
      %p151 = por %p149, %p150
      %p153 = scmp.ne.s32.totalorder %s138, %s152
      %p154 = scmp.eq.s32.totalorder %s18, 0
      %p155 = por %p153, %p154
      %p156 = scmp.le.s32.totalorder 1, %s12
      %p157 = scmp.lt.s32.totalorder %s12, 5
      %p158 = pnand %p156, %p157
      %p159 = pneg %p158
      // Predicated region
      $region9: #{femnist_net_forward.3} parent=5 // pred_check
        _
      $region10: #{femnist_net_forward.3} parent=5 // pred_check_branch
        %161 = sbr.rel (%p158) target = $region12
      $region11: #{femnist_net_forward.3} parent=5 // pred_region
        %s162 = ssub.s32 %s12, 1
        // Predicated region
        $region13: #{femnist_net_forward.3} parent=11 // pred_check
          %p163 = pneg %p85
        $region14: #{femnist_net_forward.3} parent=11 // pred_check_branch
          %165 = sbr.rel (%p163) target = $region16
        $region15: #{femnist_net_forward.3} parent=11 // pred_region
          _
        $region16: #{femnist_net_forward.3} parent=11 // pred_fallthru
          _
        // Predicated region
        $region17: #{femnist_net_forward.3} parent=11 // pred_check
          %p166 = pneg %p106
        $region18: #{femnist_net_forward.3} parent=11 // pred_check_branch
          %168 = sbr.rel (%p166) target = $region20
        $region19: #{femnist_net_forward.3} parent=11 // pred_region
          _
        $region20: #{femnist_net_forward.3} parent=11 // pred_fallthru
          _
        // Predicated region
        $region21: #{femnist_net_forward.3} parent=11 // pred_check
          %p169 = pneg %p127
        $region22: #{femnist_net_forward.3} parent=11 // pred_check_branch
          %171 = sbr.rel (%p169) target = $region24
        $region23: #{femnist_net_forward.3} parent=11 // pred_region
          _
        $region24: #{femnist_net_forward.3} parent=11 // pred_fallthru
          _
      $region12: #{femnist_net_forward.3} parent=5 // pred_fallthru
        _
      %p172 = scmp.lt.s32.totalorder %s12, 4
      // Predicated region
      $region25: #{femnist_net_forward.3} parent=5 // pred_check
        %p173 = pneg %p172
      $region26: #{femnist_net_forward.3} parent=5 // pred_check_branch
        %175 = sbr.rel (%p173) target = $region28
      $region27: #{femnist_net_forward.3} parent=5 // pred_region
        // Predicated region
        $region29: #{femnist_net_forward.3} parent=27 // pred_check
          %p176 = pneg %p32
        $region30: #{femnist_net_forward.3} parent=27 // pred_check_branch
          %178 = sbr.rel (%p176) target = $region32
        $region31: #{femnist_net_forward.3} parent=27 // pred_region
          %s179 = smul.u32 18, %s12
          %p180 = scmp.lt.s32.totalorder %s179, 71
          %s181 = scalar_select %p180, %s179, 71
          %s182 = scalar_lea.vmem %s0, %s181
          %s183 = smul.u32 18, %s12
        $region32: #{femnist_net_forward.3} parent=27 // pred_fallthru
          _
        // Predicated region
        $region33: #{femnist_net_forward.3} parent=27 // pred_check
          %p184 = pneg %p58
        $region34: #{femnist_net_forward.3} parent=27 // pred_check_branch
          %186 = sbr.rel (%p184) target = $region36
        $region35: #{femnist_net_forward.3} parent=27 // pred_region
          %s187 = smul.u32 288, %s12
          %p188 = scmp.lt.s32.totalorder %s187, 1151
          %s189 = scalar_select %p188, %s187, 1151
          %s190 = smul.addr %s189, 4
          %s191 = scalar_lea.vmem %s1, %s190
          %s192 = smul.u32 288, %s12
        $region36: #{femnist_net_forward.3} parent=27 // pred_fallthru
          _
      $region28: #{femnist_net_forward.3} parent=5 // pred_fallthru
        _
      %p193 = scmp.le.s32.totalorder 1, %s12
      %p194 = scmp.lt.s32.totalorder %s12, 5
      %p195 = pnand %p193, %p194
      %p196 = pneg %p195
      // Predicated region
      $region37: #{femnist_net_forward.3} parent=5 // pred_check
        _
      $region38: #{femnist_net_forward.3} parent=5 // pred_check_branch
        %198 = sbr.rel (%p195) target = $region40
      $region39: #{femnist_net_forward.3} parent=5 // pred_region
        %s199 = ssub.s32 %s12, 1
        %s200 = smul.u32 18, %s17
        %p201 = scmp.lt.s32.totalorder %s200, 71
        %s202 = scalar_select %p201, %s200, 71
        %s203 = scalar_lea.vmem %s0, %s202
        %p204 = pneg %p38
        %p205 = pneg %p35
        %s206 = smul.u32 288, %s17
        %p207 = scmp.lt.s32.totalorder %s206, 1151
        %s208 = scalar_select %p207, %s206, 1151
        %s209 = smul.addr %s208, 4
        %s210 = scalar_lea.vmem %s1, %s209
        %p211 = pneg %p64
        %p212 = pneg %p61
        %p213 = pneg %p85
        %p214 = pneg %p82
        %p215 = pneg %p106
        %p216 = pneg %p103
        %p217 = pneg %p127
        %p218 = pneg %p124
        %p219 = pneg %p148
        %p220 = pneg %p145
        %s221 = smul.u32 18, %s17
        %p222 = scmp.lt.s32.totalorder %s221, 71
        %s223 = scalar_select %p222, %s221, 71
        %s224 = scalar_lea.vmem %s0, %s223
        %s225 = smul.u32 18, %s17
        %s226 = smul.u32 288, %s17
        %p227 = scmp.lt.s32.totalorder %s226, 1151
        %s228 = scalar_select %p227, %s226, 1151
        %s229 = smul.addr %s228, 4
        %s230 = scalar_lea.vmem %s1, %s229
        %s231 = smul.u32 288, %s17
        %p233 = scmp.eq.s32.totalorder %s17, 0
        // Predicated region
        $region41: #{femnist_net_forward.3} parent=39 // pred_check
          %p234 = pneg %p233
        $region42: #{femnist_net_forward.3} parent=39 // pred_check_branch
          %236 = sbr.rel (%p234) target = $region44
        $region43: #{femnist_net_forward.3} parent=39 // pred_region
          %237 = vst [vmem:[#allocation2] sm:$0x3] 0.0
        $region44: #{femnist_net_forward.3} parent=39 // pred_fallthru
          _
        %v238 = vld [vmem:[#allocation2] sm:$0x3]
        %v239 = vld [vmem:[%s224] sm:$0xff]
        %v240 = vld [vmem:[%s224 + $0x8] sm:$0xff]
        %v241 = vld [vmem:[%s224 + $0x10] sm:$0x3]
        %v242 = vld [vmem:[%s230] sm:$0xf]
        %v243 = vld [vmem:[%s230 + $0x4] sm:$0xf]
        %v244 = vld [vmem:[%s230 + $0x8] sm:$0xf]
        %v245 = vld [vmem:[%s230 + $0xc] sm:$0xf]
        %v246 = vld [vmem:[%s230 + $0x10] sm:$0xf]
        %v247 = vld [vmem:[%s230 + $0x14] sm:$0xf]
        %v248 = vld [vmem:[%s230 + $0x18] sm:$0xf]
        %v249 = vld [vmem:[%s230 + $0x1c] sm:$0xf]
        %v250 = vld [vmem:[%s230 + $0x20] sm:$0xf]
        %v251 = vld [vmem:[%s230 + $0x24] sm:$0xf]
        %v252 = vld [vmem:[%s230 + $0x28] sm:$0xf]
        %v253 = vld [vmem:[%s230 + $0x2c] sm:$0xf]
        %v254 = vld [vmem:[%s230 + $0x30] sm:$0xf]
        %v255 = vld [vmem:[%s230 + $0x34] sm:$0xf]
        %v256 = vld [vmem:[%s230 + $0x38] sm:$0xf]
        %v257 = vld [vmem:[%s230 + $0x3c] sm:$0xf]
        %v258 = vld [vmem:[%s230 + $0x40] sm:$0xf]
        %v259 = vld [vmem:[%s230 + $0x44] sm:$0xf]
        %v260 = vld [vmem:[%s230 + $0x48] sm:$0xf]
        %v261 = vld [vmem:[%s230 + $0x4c] sm:$0xf]
        %v262 = vld [vmem:[%s230 + $0x50] sm:$0xf]
        %v263 = vld [vmem:[%s230 + $0x54] sm:$0xf]
        %v264 = vld [vmem:[%s230 + $0x58] sm:$0xf]
        %v265 = vld [vmem:[%s230 + $0x5c] sm:$0xf]
        %v266 = vld [vmem:[%s230 + $0x60] sm:$0xf]
        %v267 = vld [vmem:[%s230 + $0x64] sm:$0xf]
        %v268 = vld [vmem:[%s230 + $0x68] sm:$0xf]
        %v269 = vld [vmem:[%s230 + $0x6c] sm:$0xf]
        %v270 = vld [vmem:[%s230 + $0x70] sm:$0xf]
        %v271 = vld [vmem:[%s230 + $0x74] sm:$0xf]
        %v272 = vld [vmem:[%s230 + $0x78] sm:$0xf]
        %v273 = vld [vmem:[%s230 + $0x7c] sm:$0xf]
        %v274 = vld [vmem:[%s230 + $0x80] sm:$0xf]
        %v275 = vld [vmem:[%s230 + $0x84] sm:$0xf]
        %v276 = vld [vmem:[%s230 + $0x88] sm:$0xf]
        %v277 = vld [vmem:[%s230 + $0x8c] sm:$0xf]
        %v278 = vld [vmem:[%s230 + $0x90] sm:$0xf]
        %v279 = vld [vmem:[%s230 + $0x94] sm:$0xf]
        %v280 = vld [vmem:[%s230 + $0x98] sm:$0xf]
        %v281 = vld [vmem:[%s230 + $0x9c] sm:$0xf]
        %v282 = vld [vmem:[%s230 + $0xa0] sm:$0xf]
        %v283 = vld [vmem:[%s230 + $0xa4] sm:$0xf]
        %v284 = vld [vmem:[%s230 + $0xa8] sm:$0xf]
        %v285 = vld [vmem:[%s230 + $0xac] sm:$0xf]
        %v286 = vld [vmem:[%s230 + $0xb0] sm:$0xf]
        %v287 = vld [vmem:[%s230 + $0xb4] sm:$0xf]
        %v288 = vld [vmem:[%s230 + $0xb8] sm:$0xf]
        %v289 = vld [vmem:[%s230 + $0xbc] sm:$0xf]
        %v290 = vld [vmem:[%s230 + $0xc0] sm:$0xf]
        %v291 = vld [vmem:[%s230 + $0xc4] sm:$0xf]
        %v292 = vld [vmem:[%s230 + $0xc8] sm:$0xf]
        %v293 = vld [vmem:[%s230 + $0xcc] sm:$0xf]
        %v294 = vld [vmem:[%s230 + $0xd0] sm:$0xf]
        %v295 = vld [vmem:[%s230 + $0xd4] sm:$0xf]
        %v296 = vld [vmem:[%s230 + $0xd8] sm:$0xf]
        %v297 = vld [vmem:[%s230 + $0xdc] sm:$0xf]
        %v298 = vld [vmem:[%s230 + $0xe0] sm:$0xf]
        %v299 = vld [vmem:[%s230 + $0xe4] sm:$0xf]
        %v300 = vld [vmem:[%s230 + $0xe8] sm:$0xf]
        %v301 = vld [vmem:[%s230 + $0xec] sm:$0xf]
        %v302 = vld [vmem:[%s230 + $0xf0] sm:$0xf]
        %v303 = vld [vmem:[%s230 + $0xf4] sm:$0xf]
        %v304 = vld [vmem:[%s230 + $0xf8] sm:$0xf]
        %v305 = vld [vmem:[%s230 + $0xfc] sm:$0xf]
        %v306 = vld [vmem:[%s230 + $0x100] sm:$0xf]
        %v307 = vld [vmem:[%s230 + $0x104] sm:$0xf]
        %v308 = vld [vmem:[%s230 + $0x108] sm:$0xf]
        %v309 = vld [vmem:[%s230 + $0x10c] sm:$0xf]
        %v310 = vld [vmem:[%s230 + $0x110] sm:$0xf]
        %v311 = vld [vmem:[%s230 + $0x114] sm:$0xf]
        %v312 = vld [vmem:[%s230 + $0x118] sm:$0xf]
        %v313 = vld [vmem:[%s230 + $0x11c] sm:$0xf]
        %v314 = vld [vmem:[%s230 + $0x120] sm:$0xf]
        %v315 = vld [vmem:[%s230 + $0x124] sm:$0xf]
        %v316 = vld [vmem:[%s230 + $0x128] sm:$0xf]
        %v317 = vld [vmem:[%s230 + $0x12c] sm:$0xf]
        %v318 = vld [vmem:[%s230 + $0x130] sm:$0xf]
        %v319 = vld [vmem:[%s230 + $0x134] sm:$0xf]
        %v320 = vld [vmem:[%s230 + $0x138] sm:$0xf]
        %v321 = vld [vmem:[%s230 + $0x13c] sm:$0xf]
        %v322 = vld [vmem:[%s230 + $0x140] sm:$0xf]
        %v323 = vld [vmem:[%s230 + $0x144] sm:$0xf]
        %v324 = vld [vmem:[%s230 + $0x148] sm:$0xf]
        %v325 = vld [vmem:[%s230 + $0x14c] sm:$0xf]
        %v326 = vld [vmem:[%s230 + $0x150] sm:$0xf]
        %v327 = vld [vmem:[%s230 + $0x154] sm:$0xf]
        %v328 = vld [vmem:[%s230 + $0x158] sm:$0xf]
        %v329 = vld [vmem:[%s230 + $0x15c] sm:$0xf]
        %v330 = vld [vmem:[%s230 + $0x160] sm:$0xf]
        %v331 = vld [vmem:[%s230 + $0x164] sm:$0xf]
        %v332 = vld [vmem:[%s230 + $0x168] sm:$0xf]
        %v333 = vld [vmem:[%s230 + $0x16c] sm:$0xf]
        %v334 = vld [vmem:[%s230 + $0x170] sm:$0xf]
        %v335 = vld [vmem:[%s230 + $0x174] sm:$0xf]
        %v336 = vld [vmem:[%s230 + $0x178] sm:$0xf]
        %v337 = vld [vmem:[%s230 + $0x17c] sm:$0xf]
        %v338 = vld [vmem:[%s230 + $0x180] sm:$0xf]
        %v339 = vld [vmem:[%s230 + $0x184] sm:$0xf]
        %v340 = vld [vmem:[%s230 + $0x188] sm:$0xf]
        %v341 = vld [vmem:[%s230 + $0x18c] sm:$0xf]
        %v342 = vld [vmem:[%s230 + $0x190] sm:$0xf]
        %v343 = vld [vmem:[%s230 + $0x194] sm:$0xf]
        %v344 = vld [vmem:[%s230 + $0x198] sm:$0xf]
        %v345 = vld [vmem:[%s230 + $0x19c] sm:$0xf]
        %v346 = vld [vmem:[%s230 + $0x1a0] sm:$0xf]
        %v347 = vld [vmem:[%s230 + $0x1a4] sm:$0xf]
        %v348 = vld [vmem:[%s230 + $0x1a8] sm:$0xf]
        %v349 = vld [vmem:[%s230 + $0x1ac] sm:$0xf]
        %v350 = vld [vmem:[%s230 + $0x1b0] sm:$0xf]
        %v351 = vld [vmem:[%s230 + $0x1b4] sm:$0xf]
        %v352 = vld [vmem:[%s230 + $0x1b8] sm:$0xf]
        %v353 = vld [vmem:[%s230 + $0x1bc] sm:$0xf]
        %v354 = vld [vmem:[%s230 + $0x1c0] sm:$0xf]
        %v355 = vld [vmem:[%s230 + $0x1c4] sm:$0xf]
        %v356 = vld [vmem:[%s230 + $0x1c8] sm:$0xf]
        %v357 = vld [vmem:[%s230 + $0x1cc] sm:$0xf]
        %v358 = vld [vmem:[%s230 + $0x1d0] sm:$0xf]
        %v359 = vld [vmem:[%s230 + $0x1d4] sm:$0xf]
        %v360 = vld [vmem:[%s230 + $0x1d8] sm:$0xf]
        %v361 = vld [vmem:[%s230 + $0x1dc] sm:$0xf]
        %v362 = vld [vmem:[%s230 + $0x1e0] sm:$0xf]
        %v363 = vld [vmem:[%s230 + $0x1e4] sm:$0xf]
        %v364 = vld [vmem:[%s230 + $0x1e8] sm:$0xf]
        %v365 = vld [vmem:[%s230 + $0x1ec] sm:$0xf]
        %v366 = vld [vmem:[%s230 + $0x1f0] sm:$0xf]
        %v367 = vld [vmem:[%s230 + $0x1f4] sm:$0xf]
        %v368 = vld [vmem:[%s230 + $0x1f8] sm:$0xf]
        %v369 = vld [vmem:[%s230 + $0x1fc] sm:$0xf]
        %v370 = vld [vmem:[%s230 + $0x200] sm:$0xf]
        %v371 = vld [vmem:[%s230 + $0x204] sm:$0xf]
        %v372 = vld [vmem:[%s230 + $0x208] sm:$0xf]
        %v373 = vld [vmem:[%s230 + $0x20c] sm:$0xf]
        %v374 = vld [vmem:[%s230 + $0x210] sm:$0xf]
        %v375 = vld [vmem:[%s230 + $0x214] sm:$0xf]
        %v376 = vld [vmem:[%s230 + $0x218] sm:$0xf]
        %v377 = vld [vmem:[%s230 + $0x21c] sm:$0xf]
        %v378 = vld [vmem:[%s230 + $0x220] sm:$0xf]
        %v379 = vld [vmem:[%s230 + $0x224] sm:$0xf]
        %v380 = vld [vmem:[%s230 + $0x228] sm:$0xf]
        %v381 = vld [vmem:[%s230 + $0x22c] sm:$0xf]
        %v382 = vld [vmem:[%s230 + $0x230] sm:$0xf]
        %v383 = vld [vmem:[%s230 + $0x234] sm:$0xf]
        %v384 = vld [vmem:[%s230 + $0x238] sm:$0xf]
        %v385 = vld [vmem:[%s230 + $0x23c] sm:$0xf]
        %v386 = vld [vmem:[%s230 + $0x240] sm:$0xf]
        %v387 = vld [vmem:[%s230 + $0x244] sm:$0xf]
        %v388 = vld [vmem:[%s230 + $0x248] sm:$0xf]
        %v389 = vld [vmem:[%s230 + $0x24c] sm:$0xf]
        %v390 = vld [vmem:[%s230 + $0x250] sm:$0xf]
        %v391 = vld [vmem:[%s230 + $0x254] sm:$0xf]
        %v392 = vld [vmem:[%s230 + $0x258] sm:$0xf]
        %v393 = vld [vmem:[%s230 + $0x25c] sm:$0xf]
        %v394 = vld [vmem:[%s230 + $0x260] sm:$0xf]
        %v395 = vld [vmem:[%s230 + $0x264] sm:$0xf]
        %v396 = vld [vmem:[%s230 + $0x268] sm:$0xf]
        %v397 = vld [vmem:[%s230 + $0x26c] sm:$0xf]
        %v398 = vld [vmem:[%s230 + $0x270] sm:$0xf]
        %v399 = vld [vmem:[%s230 + $0x274] sm:$0xf]
        %v400 = vld [vmem:[%s230 + $0x278] sm:$0xf]
        %v401 = vld [vmem:[%s230 + $0x27c] sm:$0xf]
        %v402 = vld [vmem:[%s230 + $0x280] sm:$0xf]
        %v403 = vld [vmem:[%s230 + $0x284] sm:$0xf]
        %v404 = vld [vmem:[%s230 + $0x288] sm:$0xf]
        %v405 = vld [vmem:[%s230 + $0x28c] sm:$0xf]
        %v406 = vld [vmem:[%s230 + $0x290] sm:$0xf]
        %v407 = vld [vmem:[%s230 + $0x294] sm:$0xf]
        %v408 = vld [vmem:[%s230 + $0x298] sm:$0xf]
        %v409 = vld [vmem:[%s230 + $0x29c] sm:$0xf]
        %v410 = vld [vmem:[%s230 + $0x2a0] sm:$0xf]
        %v411 = vld [vmem:[%s230 + $0x2a4] sm:$0xf]
        %v412 = vld [vmem:[%s230 + $0x2a8] sm:$0xf]
        %v413 = vld [vmem:[%s230 + $0x2ac] sm:$0xf]
        %v414 = vld [vmem:[%s230 + $0x2b0] sm:$0xf]
        %v415 = vld [vmem:[%s230 + $0x2b4] sm:$0xf]
        %v416 = vld [vmem:[%s230 + $0x2b8] sm:$0xf]
        %v417 = vld [vmem:[%s230 + $0x2bc] sm:$0xf]
        %v418 = vld [vmem:[%s230 + $0x2c0] sm:$0xf]
        %v419 = vld [vmem:[%s230 + $0x2c4] sm:$0xf]
        %v420 = vld [vmem:[%s230 + $0x2c8] sm:$0xf]
        %v421 = vld [vmem:[%s230 + $0x2cc] sm:$0xf]
        %v422 = vld [vmem:[%s230 + $0x2d0] sm:$0xf]
        %v423 = vld [vmem:[%s230 + $0x2d4] sm:$0xf]
        %v424 = vld [vmem:[%s230 + $0x2d8] sm:$0xf]
        %v425 = vld [vmem:[%s230 + $0x2dc] sm:$0xf]
        %v426 = vld [vmem:[%s230 + $0x2e0] sm:$0xf]
        %v427 = vld [vmem:[%s230 + $0x2e4] sm:$0xf]
        %v428 = vld [vmem:[%s230 + $0x2e8] sm:$0xf]
        %v429 = vld [vmem:[%s230 + $0x2ec] sm:$0xf]
        %v430 = vld [vmem:[%s230 + $0x2f0] sm:$0xf]
        %v431 = vld [vmem:[%s230 + $0x2f4] sm:$0xf]
        %v432 = vld [vmem:[%s230 + $0x2f8] sm:$0xf]
        %v433 = vld [vmem:[%s230 + $0x2fc] sm:$0xf]
        %v434 = vld [vmem:[%s230 + $0x300] sm:$0xf]
        %v435 = vld [vmem:[%s230 + $0x304] sm:$0xf]
        %v436 = vld [vmem:[%s230 + $0x308] sm:$0xf]
        %v437 = vld [vmem:[%s230 + $0x30c] sm:$0xf]
        %v438 = vld [vmem:[%s230 + $0x310] sm:$0xf]
        %v439 = vld [vmem:[%s230 + $0x314] sm:$0xf]
        %v440 = vld [vmem:[%s230 + $0x318] sm:$0xf]
        %v441 = vld [vmem:[%s230 + $0x31c] sm:$0xf]
        %v442 = vld [vmem:[%s230 + $0x320] sm:$0xf]
        %v443 = vld [vmem:[%s230 + $0x324] sm:$0xf]
        %v444 = vld [vmem:[%s230 + $0x328] sm:$0xf]
        %v445 = vld [vmem:[%s230 + $0x32c] sm:$0xf]
        %v446 = vld [vmem:[%s230 + $0x330] sm:$0xf]
        %v447 = vld [vmem:[%s230 + $0x334] sm:$0xf]
        %v448 = vld [vmem:[%s230 + $0x338] sm:$0xf]
        %v449 = vld [vmem:[%s230 + $0x33c] sm:$0xf]
        %v450 = vld [vmem:[%s230 + $0x340] sm:$0xf]
        %v451 = vld [vmem:[%s230 + $0x344] sm:$0xf]
        %v452 = vld [vmem:[%s230 + $0x348] sm:$0xf]
        %v453 = vld [vmem:[%s230 + $0x34c] sm:$0xf]
        %v454 = vld [vmem:[%s230 + $0x350] sm:$0xf]
        %v455 = vld [vmem:[%s230 + $0x354] sm:$0xf]
        %v456 = vld [vmem:[%s230 + $0x358] sm:$0xf]
        %v457 = vld [vmem:[%s230 + $0x35c] sm:$0xf]
        %v458 = vld [vmem:[%s230 + $0x360] sm:$0xf]
        %v459 = vld [vmem:[%s230 + $0x364] sm:$0xf]
        %v460 = vld [vmem:[%s230 + $0x368] sm:$0xf]
        %v461 = vld [vmem:[%s230 + $0x36c] sm:$0xf]
        %v462 = vld [vmem:[%s230 + $0x370] sm:$0xf]
        %v463 = vld [vmem:[%s230 + $0x374] sm:$0xf]
        %v464 = vld [vmem:[%s230 + $0x378] sm:$0xf]
        %v465 = vld [vmem:[%s230 + $0x37c] sm:$0xf]
        %v466 = vld [vmem:[%s230 + $0x380] sm:$0xf]
        %v467 = vld [vmem:[%s230 + $0x384] sm:$0xf]
        %v468 = vld [vmem:[%s230 + $0x388] sm:$0xf]
        %v469 = vld [vmem:[%s230 + $0x38c] sm:$0xf]
        %v470 = vld [vmem:[%s230 + $0x390] sm:$0xf]
        %v471 = vld [vmem:[%s230 + $0x394] sm:$0xf]
        %v472 = vld [vmem:[%s230 + $0x398] sm:$0xf]
        %v473 = vld [vmem:[%s230 + $0x39c] sm:$0xf]
        %v474 = vld [vmem:[%s230 + $0x3a0] sm:$0xf]
        %v475 = vld [vmem:[%s230 + $0x3a4] sm:$0xf]
        %v476 = vld [vmem:[%s230 + $0x3a8] sm:$0xf]
        %v477 = vld [vmem:[%s230 + $0x3ac] sm:$0xf]
        %v478 = vld [vmem:[%s230 + $0x3b0] sm:$0xf]
        %v479 = vld [vmem:[%s230 + $0x3b4] sm:$0xf]
        %v480 = vld [vmem:[%s230 + $0x3b8] sm:$0xf]
        %v481 = vld [vmem:[%s230 + $0x3bc] sm:$0xf]
        %v482 = vld [vmem:[%s230 + $0x3c0] sm:$0xf]
        %v483 = vld [vmem:[%s230 + $0x3c4] sm:$0xf]
        %v484 = vld [vmem:[%s230 + $0x3c8] sm:$0xf]
        %v485 = vld [vmem:[%s230 + $0x3cc] sm:$0xf]
        %v486 = vld [vmem:[%s230 + $0x3d0] sm:$0xf]
        %v487 = vld [vmem:[%s230 + $0x3d4] sm:$0xf]
        %v488 = vld [vmem:[%s230 + $0x3d8] sm:$0xf]
        %v489 = vld [vmem:[%s230 + $0x3dc] sm:$0xf]
        %v490 = vld [vmem:[%s230 + $0x3e0] sm:$0xf]
        %v491 = vld [vmem:[%s230 + $0x3e4] sm:$0xf]
        %v492 = vld [vmem:[%s230 + $0x3e8] sm:$0xf]
        %v493 = vld [vmem:[%s230 + $0x3ec] sm:$0xf]
        %v494 = vld [vmem:[%s230 + $0x3f0] sm:$0xf]
        %v495 = vld [vmem:[%s230 + $0x3f4] sm:$0xf]
        %v496 = vld [vmem:[%s230 + $0x3f8] sm:$0xf]
        %v497 = vld [vmem:[%s230 + $0x3fc] sm:$0xf]
        %v498 = vld [vmem:[%s230 + $0x400] sm:$0xf]
        %v499 = vld [vmem:[%s230 + $0x404] sm:$0xf]
        %v500 = vld [vmem:[%s230 + $0x408] sm:$0xf]
        %v501 = vld [vmem:[%s230 + $0x40c] sm:$0xf]
        %v502 = vld [vmem:[%s230 + $0x410] sm:$0xf]
        %v503 = vld [vmem:[%s230 + $0x414] sm:$0xf]
        %v504 = vld [vmem:[%s230 + $0x418] sm:$0xf]
        %v505 = vld [vmem:[%s230 + $0x41c] sm:$0xf]
        %v506 = vld [vmem:[%s230 + $0x420] sm:$0xf]
        %v507 = vld [vmem:[%s230 + $0x424] sm:$0xf]
        %v508 = vld [vmem:[%s230 + $0x428] sm:$0xf]
        %v509 = vld [vmem:[%s230 + $0x42c] sm:$0xf]
        %v510 = vld [vmem:[%s230 + $0x430] sm:$0xf]
        %v511 = vld [vmem:[%s230 + $0x434] sm:$0xf]
        %v512 = vld [vmem:[%s230 + $0x438] sm:$0xf]
        %v513 = vld [vmem:[%s230 + $0x43c] sm:$0xf]
        %v514 = vld [vmem:[%s230 + $0x440] sm:$0xf]
        %v515 = vld [vmem:[%s230 + $0x444] sm:$0xf]
        %v516 = vld [vmem:[%s230 + $0x448] sm:$0xf]
        %v517 = vld [vmem:[%s230 + $0x44c] sm:$0xf]
        %v518 = vld [vmem:[%s230 + $0x450] sm:$0xf]
        %v519 = vld [vmem:[%s230 + $0x454] sm:$0xf]
        %v520 = vld [vmem:[%s230 + $0x458] sm:$0xf]
        %v521 = vld [vmem:[%s230 + $0x45c] sm:$0xf]
        %v522 = vld [vmem:[%s230 + $0x460] sm:$0xf]
        %v523 = vld [vmem:[%s230 + $0x464] sm:$0xf]
        %v524 = vld [vmem:[%s230 + $0x468] sm:$0xf]
        %v525 = vld [vmem:[%s230 + $0x46c] sm:$0xf]
        %v526 = vld [vmem:[%s230 + $0x470] sm:$0xf]
        %v527 = vld [vmem:[%s230 + $0x474] sm:$0xf]
        %v528 = vld [vmem:[%s230 + $0x478] sm:$0xf]
        %v529 = vld [vmem:[%s230 + $0x47c] sm:$0xf]
        %v533 = vcombine.high %v239, %v239
        %v535 = vunpack.c.l.s4 1966171168
        %v536 = vunpack.c.0.s8 %v535
        %v537 = vlaneseq
        %v538 = vshrl.u32 %v537, 7
        %v539 = vsub.s32 %v536, %v538
        %v540 = vrot.slane %v239, %v539
        %v542 = vunpack.c.l.s4 1966171168
        %v543 = vunpack.c.0.s8 %v542
        %v544 = vlaneseq
        %v545 = vshrl.u32 %v544, 7
        %v546 = vsub.s32 %v543, %v545
        %v547 = vrot.slane %v533, %v546
        %v548 = vcombine.high %v540, %v540
        %v549 = vcombine.high %v547, %v547
        %v551 = vunpack.c.l.s4 1966171168
        %v552 = vunpack.c.0.s8 %v551
        %v553 = vlaneseq
        %v554 = vshrl.u32 %v553, 7
        %v555 = vsub.s32 %v552, %v554
        %v556 = vrot.slane %v540, %v555
        %v558 = vunpack.c.l.s4 1966171168
        %v559 = vunpack.c.0.s8 %v558
        %v560 = vlaneseq
        %v561 = vshrl.u32 %v560, 7
        %v562 = vsub.s32 %v559, %v561
        %v563 = vrot.slane %v547, %v562
        %v565 = vunpack.c.l.s4 1966171168
        %v566 = vunpack.c.0.s8 %v565
        %v567 = vlaneseq
        %v568 = vshrl.u32 %v567, 7
        %v569 = vsub.s32 %v566, %v568
        %v570 = vrot.slane %v548, %v569
        %v572 = vunpack.c.l.s4 1966171168
        %v573 = vunpack.c.0.s8 %v572
        %v574 = vlaneseq
        %v575 = vshrl.u32 %v574, 7
        %v576 = vsub.s32 %v573, %v575
        %v577 = vrot.slane %v549, %v576
        %v578 = vcombine.high %v556, %v556
        %v579 = vcombine.high %v563, %v563
        %v580 = vcombine.high %v570, %v570
        %v581 = vcombine.high %v577, %v577
        %v582 = vcombine.high %v240, %v240
        %v584 = vunpack.c.l.s4 1966171168
        %v585 = vunpack.c.0.s8 %v584
        %v586 = vlaneseq
        %v587 = vshrl.u32 %v586, 7
        %v588 = vsub.s32 %v585, %v587
        %v589 = vrot.slane %v240, %v588
        %v591 = vunpack.c.l.s4 1966171168
        %v592 = vunpack.c.0.s8 %v591
        %v593 = vlaneseq
        %v594 = vshrl.u32 %v593, 7
        %v595 = vsub.s32 %v592, %v594
        %v596 = vrot.slane %v582, %v595
        %v597 = vcombine.high %v589, %v589
        %v598 = vcombine.high %v596, %v596
        %v600 = vunpack.c.l.s4 1966171168
        %v601 = vunpack.c.0.s8 %v600
        %v602 = vlaneseq
        %v603 = vshrl.u32 %v602, 7
        %v604 = vsub.s32 %v601, %v603
        %v605 = vrot.slane %v589, %v604
        %v607 = vunpack.c.l.s4 1966171168
        %v608 = vunpack.c.0.s8 %v607
        %v609 = vlaneseq
        %v610 = vshrl.u32 %v609, 7
        %v611 = vsub.s32 %v608, %v610
        %v612 = vrot.slane %v596, %v611
        %v614 = vunpack.c.l.s4 1966171168
        %v615 = vunpack.c.0.s8 %v614
        %v616 = vlaneseq
        %v617 = vshrl.u32 %v616, 7
        %v618 = vsub.s32 %v615, %v617
        %v619 = vrot.slane %v597, %v618
        %v621 = vunpack.c.l.s4 1966171168
        %v622 = vunpack.c.0.s8 %v621
        %v623 = vlaneseq
        %v624 = vshrl.u32 %v623, 7
        %v625 = vsub.s32 %v622, %v624
        %v626 = vrot.slane %v598, %v625
        %v627 = vcombine.high %v605, %v605
        %v628 = vcombine.high %v612, %v612
        %v629 = vcombine.high %v619, %v619
        %v630 = vcombine.high %v626, %v626
        %v632 = vunpack.c.l.s4 1966171168
        %v633 = vunpack.c.0.s8 %v632
        %v634 = vlaneseq
        %v635 = vshrl.u32 %v634, 7
        %v636 = vsub.s32 %v633, %v635
        %v637 = vrot.slane %v241, %v636
        %v638 = vcombine.high %v637, %v637
        %v640 = vunpack.c.l.s4 1966171168
        %v641 = vunpack.c.0.s8 %v640
        %v642 = vlaneseq
        %v643 = vshrl.u32 %v642, 7
        %v644 = vsub.s32 %v641, %v643
        %v645 = vrot.slane %v637, %v644
        %v647 = vunpack.c.l.s4 1966171168
        %v648 = vunpack.c.0.s8 %v647
        %v649 = vlaneseq
        %v650 = vshrl.u32 %v649, 7
        %v651 = vsub.s32 %v648, %v650
        %v652 = vrot.slane %v638, %v651
        %v959 = vunpack.c.l.b16 %v242
        %v960 = vunpack.c.l.b16 %v243
        %v961 = vunpack.c.l.b16 %v244
        %v962 = vunpack.c.l.b16 %v245
        %v963 = vunpack.c.l.b16 %v246
        %v964 = vunpack.c.l.b16 %v247
        %v965 = vunpack.c.l.b16 %v248
        %v966 = vunpack.c.l.b16 %v249
        %v967 = vunpack.c.l.b16 %v250
        %v968 = vunpack.c.l.b16 %v251
        %v969 = vunpack.c.l.b16 %v252
        %v970 = vunpack.c.l.b16 %v253
        %v971 = vunpack.c.l.b16 %v254
        %v972 = vunpack.c.l.b16 %v255
        %v973 = vunpack.c.l.b16 %v256
        %v974 = vunpack.c.l.b16 %v257
        %v975 = vunpack.c.l.b16 %v258
        %v976 = vunpack.c.l.b16 %v259
        %v977 = vunpack.c.l.b16 %v260
        %v978 = vunpack.c.l.b16 %v261
        %v979 = vunpack.c.l.b16 %v262
        %v980 = vunpack.c.l.b16 %v263
        %v981 = vunpack.c.l.b16 %v264
        %v982 = vunpack.c.l.b16 %v265
        %v983 = vunpack.c.l.b16 %v266
        %v984 = vunpack.c.l.b16 %v267
        %v985 = vunpack.c.l.b16 %v268
        %v986 = vunpack.c.l.b16 %v269
        %v987 = vunpack.c.l.b16 %v270
        %v988 = vunpack.c.l.b16 %v271
        %v989 = vunpack.c.l.b16 %v272
        %v990 = vunpack.c.l.b16 %v273
        %v991 = vunpack.c.l.b16 %v274
        %v992 = vunpack.c.l.b16 %v275
        %v993 = vunpack.c.l.b16 %v276
        %v994 = vunpack.c.l.b16 %v277
        %v995 = vunpack.c.l.b16 %v278
        %v996 = vunpack.c.l.b16 %v279
        %v997 = vunpack.c.l.b16 %v280
        %v998 = vunpack.c.l.b16 %v281
        %v999 = vunpack.c.l.b16 %v282
        %v1000 = vunpack.c.l.b16 %v283
        %v1001 = vunpack.c.l.b16 %v284
        %v1002 = vunpack.c.l.b16 %v285
        %v1003 = vunpack.c.l.b16 %v286
        %v1004 = vunpack.c.l.b16 %v287
        %v1005 = vunpack.c.l.b16 %v288
        %v1006 = vunpack.c.l.b16 %v289
        %v1007 = vunpack.c.l.b16 %v290
        %v1008 = vunpack.c.l.b16 %v291
        %v1009 = vunpack.c.l.b16 %v292
        %v1010 = vunpack.c.l.b16 %v293
        %v1011 = vunpack.c.l.b16 %v294
        %v1012 = vunpack.c.l.b16 %v295
        %v1013 = vunpack.c.l.b16 %v296
        %v1014 = vunpack.c.l.b16 %v297
        %v1015 = vunpack.c.l.b16 %v298
        %v1016 = vunpack.c.l.b16 %v299
        %v1017 = vunpack.c.l.b16 %v300
        %v1018 = vunpack.c.l.b16 %v301
        %v1019 = vunpack.c.l.b16 %v302
        %v1020 = vunpack.c.l.b16 %v303
        %v1021 = vunpack.c.l.b16 %v304
        %v1022 = vunpack.c.l.b16 %v305
        %v1023 = vunpack.c.l.b16 %v306
        %v1024 = vunpack.c.l.b16 %v307
        %v1025 = vunpack.c.l.b16 %v308
        %v1026 = vunpack.c.l.b16 %v309
        %v1027 = vunpack.c.l.b16 %v310
        %v1028 = vunpack.c.l.b16 %v311
        %v1029 = vunpack.c.l.b16 %v312
        %v1030 = vunpack.c.l.b16 %v313
        %v1031 = vunpack.c.l.b16 %v314
        %v1032 = vunpack.c.l.b16 %v315
        %v1033 = vunpack.c.l.b16 %v316
        %v1034 = vunpack.c.l.b16 %v317
        %v1035 = vunpack.c.l.b16 %v318
        %v1036 = vunpack.c.l.b16 %v319
        %v1037 = vunpack.c.l.b16 %v320
        %v1038 = vunpack.c.l.b16 %v321
        %v1039 = vunpack.c.l.b16 %v322
        %v1040 = vunpack.c.l.b16 %v323
        %v1041 = vunpack.c.l.b16 %v324
        %v1042 = vunpack.c.l.b16 %v325
        %v1043 = vunpack.c.l.b16 %v326
        %v1044 = vunpack.c.l.b16 %v327
        %v1045 = vunpack.c.l.b16 %v328
        %v1046 = vunpack.c.l.b16 %v329
        %v1047 = vunpack.c.l.b16 %v330
        %v1048 = vunpack.c.l.b16 %v331
        %v1049 = vunpack.c.l.b16 %v332
        %v1050 = vunpack.c.l.b16 %v333
        %v1051 = vunpack.c.l.b16 %v334
        %v1052 = vunpack.c.l.b16 %v335
        %v1053 = vunpack.c.l.b16 %v336
        %v1054 = vunpack.c.l.b16 %v337
        %v1055 = vunpack.c.l.b16 %v338
        %v1056 = vunpack.c.l.b16 %v339
        %v1057 = vunpack.c.l.b16 %v340
        %v1058 = vunpack.c.l.b16 %v341
        %v1059 = vunpack.c.l.b16 %v342
        %v1060 = vunpack.c.l.b16 %v343
        %v1061 = vunpack.c.l.b16 %v344
        %v1062 = vunpack.c.l.b16 %v345
        %v1063 = vunpack.c.l.b16 %v346
        %v1064 = vunpack.c.l.b16 %v347
        %v1065 = vunpack.c.l.b16 %v348
        %v1066 = vunpack.c.l.b16 %v349
        %v1067 = vunpack.c.l.b16 %v350
        %v1068 = vunpack.c.l.b16 %v351
        %v1069 = vunpack.c.l.b16 %v352
        %v1070 = vunpack.c.l.b16 %v353
        %v1071 = vunpack.c.l.b16 %v354
        %v1072 = vunpack.c.l.b16 %v355
        %v1073 = vunpack.c.l.b16 %v356
        %v1074 = vunpack.c.l.b16 %v357
        %v1075 = vunpack.c.l.b16 %v358
        %v1076 = vunpack.c.l.b16 %v359
        %v1077 = vunpack.c.l.b16 %v360
        %v1078 = vunpack.c.l.b16 %v361
        %v1079 = vunpack.c.l.b16 %v362
        %v1080 = vunpack.c.l.b16 %v363
        %v1081 = vunpack.c.l.b16 %v364
        %v1082 = vunpack.c.l.b16 %v365
        %v1083 = vunpack.c.l.b16 %v366
        %v1084 = vunpack.c.l.b16 %v367
        %v1085 = vunpack.c.l.b16 %v368
        %v1086 = vunpack.c.l.b16 %v369
        %v1087 = vunpack.c.l.b16 %v370
        %v1088 = vunpack.c.l.b16 %v371
        %v1089 = vunpack.c.l.b16 %v372
        %v1090 = vunpack.c.l.b16 %v373
        %v1091 = vunpack.c.l.b16 %v374
        %v1092 = vunpack.c.l.b16 %v375
        %v1093 = vunpack.c.l.b16 %v376
        %v1094 = vunpack.c.l.b16 %v377
        %v1095 = vunpack.c.l.b16 %v378
        %v1096 = vunpack.c.l.b16 %v379
        %v1097 = vunpack.c.l.b16 %v380
        %v1098 = vunpack.c.l.b16 %v381
        %v1099 = vunpack.c.l.b16 %v382
        %v1100 = vunpack.c.l.b16 %v383
        %v1101 = vunpack.c.l.b16 %v384
        %v1102 = vunpack.c.l.b16 %v385
        %v1103 = vunpack.c.l.b16 %v386
        %v1104 = vunpack.c.l.b16 %v387
        %v1105 = vunpack.c.l.b16 %v388
        %v1106 = vunpack.c.l.b16 %v389
        %v1107 = vunpack.c.l.b16 %v390
        %v1108 = vunpack.c.l.b16 %v391
        %v1109 = vunpack.c.l.b16 %v392
        %v1110 = vunpack.c.l.b16 %v393
        %v1111 = vunpack.c.l.b16 %v394
        %v1112 = vunpack.c.l.b16 %v395
        %v1113 = vunpack.c.l.b16 %v396
        %v1114 = vunpack.c.l.b16 %v397
        %v1115 = vunpack.c.l.b16 %v398
        %v1116 = vunpack.c.l.b16 %v399
        %v1117 = vunpack.c.l.b16 %v400
        %v1118 = vunpack.c.l.b16 %v401
        %v1119 = vunpack.c.l.b16 %v402
        %v1120 = vunpack.c.l.b16 %v403
        %v1121 = vunpack.c.l.b16 %v404
        %v1122 = vunpack.c.l.b16 %v405
        %v1123 = vunpack.c.l.b16 %v406
        %v1124 = vunpack.c.l.b16 %v407
        %v1125 = vunpack.c.l.b16 %v408
        %v1126 = vunpack.c.l.b16 %v409
        %v1127 = vunpack.c.l.b16 %v410
        %v1128 = vunpack.c.l.b16 %v411
        %v1129 = vunpack.c.l.b16 %v412
        %v1130 = vunpack.c.l.b16 %v413
        %v1131 = vunpack.c.l.b16 %v414
        %v1132 = vunpack.c.l.b16 %v415
        %v1133 = vunpack.c.l.b16 %v416
        %v1134 = vunpack.c.l.b16 %v417
        %v1135 = vunpack.c.l.b16 %v418
        %v1136 = vunpack.c.l.b16 %v419
        %v1137 = vunpack.c.l.b16 %v420
        %v1138 = vunpack.c.l.b16 %v421
        %v1139 = vunpack.c.l.b16 %v422
        %v1140 = vunpack.c.l.b16 %v423
        %v1141 = vunpack.c.l.b16 %v424
        %v1142 = vunpack.c.l.b16 %v425
        %v1143 = vunpack.c.l.b16 %v426
        %v1144 = vunpack.c.l.b16 %v427
        %v1145 = vunpack.c.l.b16 %v428
        %v1146 = vunpack.c.l.b16 %v429
        %v1147 = vunpack.c.l.b16 %v430
        %v1148 = vunpack.c.l.b16 %v431
        %v1149 = vunpack.c.l.b16 %v432
        %v1150 = vunpack.c.l.b16 %v433
        %v1151 = vunpack.c.l.b16 %v434
        %v1152 = vunpack.c.l.b16 %v435
        %v1153 = vunpack.c.l.b16 %v436
        %v1154 = vunpack.c.l.b16 %v437
        %v1155 = vunpack.c.l.b16 %v438
        %v1156 = vunpack.c.l.b16 %v439
        %v1157 = vunpack.c.l.b16 %v440
        %v1158 = vunpack.c.l.b16 %v441
        %v1159 = vunpack.c.l.b16 %v442
        %v1160 = vunpack.c.l.b16 %v443
        %v1161 = vunpack.c.l.b16 %v444
        %v1162 = vunpack.c.l.b16 %v445
        %v1163 = vunpack.c.l.b16 %v446
        %v1164 = vunpack.c.l.b16 %v447
        %v1165 = vunpack.c.l.b16 %v448
        %v1166 = vunpack.c.l.b16 %v449
        %v1167 = vunpack.c.l.b16 %v450
        %v1168 = vunpack.c.l.b16 %v451
        %v1169 = vunpack.c.l.b16 %v452
        %v1170 = vunpack.c.l.b16 %v453
        %v1171 = vunpack.c.l.b16 %v454
        %v1172 = vunpack.c.l.b16 %v455
        %v1173 = vunpack.c.l.b16 %v456
        %v1174 = vunpack.c.l.b16 %v457
        %v1175 = vunpack.c.l.b16 %v458
        %v1176 = vunpack.c.l.b16 %v459
        %v1177 = vunpack.c.l.b16 %v460
        %v1178 = vunpack.c.l.b16 %v461
        %v1179 = vunpack.c.l.b16 %v462
        %v1180 = vunpack.c.l.b16 %v463
        %v1181 = vunpack.c.l.b16 %v464
        %v1182 = vunpack.c.l.b16 %v465
        %v1183 = vunpack.c.l.b16 %v466
        %v1184 = vunpack.c.l.b16 %v467
        %v1185 = vunpack.c.l.b16 %v468
        %v1186 = vunpack.c.l.b16 %v469
        %v1187 = vunpack.c.l.b16 %v470
        %v1188 = vunpack.c.l.b16 %v471
        %v1189 = vunpack.c.l.b16 %v472
        %v1190 = vunpack.c.l.b16 %v473
        %v1191 = vunpack.c.l.b16 %v474
        %v1192 = vunpack.c.l.b16 %v475
        %v1193 = vunpack.c.l.b16 %v476
        %v1194 = vunpack.c.l.b16 %v477
        %v1195 = vunpack.c.l.b16 %v478
        %v1196 = vunpack.c.l.b16 %v479
        %v1197 = vunpack.c.l.b16 %v480
        %v1198 = vunpack.c.l.b16 %v481
        %v1199 = vunpack.c.l.b16 %v482
        %v1200 = vunpack.c.l.b16 %v483
        %v1201 = vunpack.c.l.b16 %v484
        %v1202 = vunpack.c.l.b16 %v485
        %v1203 = vunpack.c.l.b16 %v486
        %v1204 = vunpack.c.l.b16 %v487
        %v1205 = vunpack.c.l.b16 %v488
        %v1206 = vunpack.c.l.b16 %v489
        %v1207 = vunpack.c.l.b16 %v490
        %v1208 = vunpack.c.l.b16 %v491
        %v1209 = vunpack.c.l.b16 %v492
        %v1210 = vunpack.c.l.b16 %v493
        %v1211 = vunpack.c.l.b16 %v494
        %v1212 = vunpack.c.l.b16 %v495
        %v1213 = vunpack.c.l.b16 %v496
        %v1214 = vunpack.c.l.b16 %v497
        %v1215 = vunpack.c.l.b16 %v498
        %v1216 = vunpack.c.l.b16 %v499
        %v1217 = vunpack.c.l.b16 %v500
        %v1218 = vunpack.c.l.b16 %v501
        %v1219 = vunpack.c.l.b16 %v502
        %v1220 = vunpack.c.l.b16 %v503
        %v1221 = vunpack.c.l.b16 %v504
        %v1222 = vunpack.c.l.b16 %v505
        %v1223 = vunpack.c.l.b16 %v506
        %v1224 = vunpack.c.l.b16 %v507
        %v1225 = vunpack.c.l.b16 %v508
        %v1226 = vunpack.c.l.b16 %v509
        %v1227 = vunpack.c.l.b16 %v510
        %v1228 = vunpack.c.l.b16 %v511
        %v1229 = vunpack.c.l.b16 %v512
        %v1230 = vunpack.c.l.b16 %v513
        %v1231 = vunpack.c.l.b16 %v514
        %v1232 = vunpack.c.l.b16 %v515
        %v1233 = vunpack.c.l.b16 %v516
        %v1234 = vunpack.c.l.b16 %v517
        %v1235 = vunpack.c.l.b16 %v518
        %v1236 = vunpack.c.l.b16 %v519
        %v1237 = vunpack.c.l.b16 %v520
        %v1238 = vunpack.c.l.b16 %v521
        %v1239 = vunpack.c.l.b16 %v522
        %v1240 = vunpack.c.l.b16 %v523
        %v1241 = vunpack.c.l.b16 %v524
        %v1242 = vunpack.c.l.b16 %v525
        %v1243 = vunpack.c.l.b16 %v526
        %v1244 = vunpack.c.l.b16 %v527
        %v1245 = vunpack.c.l.b16 %v528
        %v1246 = vunpack.c.l.b16 %v529
        %v1247 = vpack.c.b16 %v960, %v959
        %v1248 = vpack.c.b16 %v962, %v961
        %v1249 = vpack.c.b16 %v964, %v963
        %v1250 = vpack.c.b16 %v966, %v965
        %v1251 = vpack.c.b16 %v968, %v967
        %v1252 = vpack.c.b16 %v970, %v969
        %v1253 = vpack.c.b16 %v972, %v971
        %v1254 = vpack.c.b16 %v974, %v973
        %v1255 = vpack.c.b16 %v976, %v975
        %v1256 = vpack.c.b16 %v978, %v977
        %v1257 = vpack.c.b16 %v980, %v979
        %v1258 = vpack.c.b16 %v982, %v981
        %v1259 = vpack.c.b16 %v984, %v983
        %v1260 = vpack.c.b16 %v986, %v985
        %v1261 = vpack.c.b16 %v988, %v987
        %v1262 = vpack.c.b16 %v990, %v989
        %v1263 = vpack.c.b16 %v992, %v991
        %v1264 = vpack.c.b16 %v994, %v993
        %v1265 = vpack.c.b16 %v996, %v995
        %v1266 = vpack.c.b16 %v998, %v997
        %v1267 = vpack.c.b16 %v1000, %v999
        %v1268 = vpack.c.b16 %v1002, %v1001
        %v1269 = vpack.c.b16 %v1004, %v1003
        %v1270 = vpack.c.b16 %v1006, %v1005
        %v1271 = vpack.c.b16 %v1008, %v1007
        %v1272 = vpack.c.b16 %v1010, %v1009
        %v1273 = vpack.c.b16 %v1012, %v1011
        %v1274 = vpack.c.b16 %v1014, %v1013
        %v1275 = vpack.c.b16 %v1016, %v1015
        %v1276 = vpack.c.b16 %v1018, %v1017
        %v1277 = vpack.c.b16 %v1020, %v1019
        %v1278 = vpack.c.b16 %v1022, %v1021
        %v1279 = vpack.c.b16 %v1024, %v1023
        %v1280 = vpack.c.b16 %v1026, %v1025
        %v1281 = vpack.c.b16 %v1028, %v1027
        %v1282 = vpack.c.b16 %v1030, %v1029
        %v1283 = vpack.c.b16 %v1032, %v1031
        %v1284 = vpack.c.b16 %v1034, %v1033
        %v1285 = vpack.c.b16 %v1036, %v1035
        %v1286 = vpack.c.b16 %v1038, %v1037
        %v1287 = vpack.c.b16 %v1040, %v1039
        %v1288 = vpack.c.b16 %v1042, %v1041
        %v1289 = vpack.c.b16 %v1044, %v1043
        %v1290 = vpack.c.b16 %v1046, %v1045
        %v1291 = vpack.c.b16 %v1048, %v1047
        %v1292 = vpack.c.b16 %v1050, %v1049
        %v1293 = vpack.c.b16 %v1052, %v1051
        %v1294 = vpack.c.b16 %v1054, %v1053
        %v1295 = vpack.c.b16 %v1056, %v1055
        %v1296 = vpack.c.b16 %v1058, %v1057
        %v1297 = vpack.c.b16 %v1060, %v1059
        %v1298 = vpack.c.b16 %v1062, %v1061
        %v1299 = vpack.c.b16 %v1064, %v1063
        %v1300 = vpack.c.b16 %v1066, %v1065
        %v1301 = vpack.c.b16 %v1068, %v1067
        %v1302 = vpack.c.b16 %v1070, %v1069
        %v1303 = vpack.c.b16 %v1072, %v1071
        %v1304 = vpack.c.b16 %v1074, %v1073
        %v1305 = vpack.c.b16 %v1076, %v1075
        %v1306 = vpack.c.b16 %v1078, %v1077
        %v1307 = vpack.c.b16 %v1080, %v1079
        %v1308 = vpack.c.b16 %v1082, %v1081
        %v1309 = vpack.c.b16 %v1084, %v1083
        %v1310 = vpack.c.b16 %v1086, %v1085
        %v1311 = vpack.c.b16 %v1088, %v1087
        %v1312 = vpack.c.b16 %v1090, %v1089
        %v1313 = vpack.c.b16 %v1092, %v1091
        %v1314 = vpack.c.b16 %v1094, %v1093
        %v1315 = vpack.c.b16 %v1096, %v1095
        %v1316 = vpack.c.b16 %v1098, %v1097
        %v1317 = vpack.c.b16 %v1100, %v1099
        %v1318 = vpack.c.b16 %v1102, %v1101
        %v1319 = vpack.c.b16 %v1104, %v1103
        %v1320 = vpack.c.b16 %v1106, %v1105
        %v1321 = vpack.c.b16 %v1108, %v1107
        %v1322 = vpack.c.b16 %v1110, %v1109
        %v1323 = vpack.c.b16 %v1112, %v1111
        %v1324 = vpack.c.b16 %v1114, %v1113
        %v1325 = vpack.c.b16 %v1116, %v1115
        %v1326 = vpack.c.b16 %v1118, %v1117
        %v1327 = vpack.c.b16 %v1120, %v1119
        %v1328 = vpack.c.b16 %v1122, %v1121
        %v1329 = vpack.c.b16 %v1124, %v1123
        %v1330 = vpack.c.b16 %v1126, %v1125
        %v1331 = vpack.c.b16 %v1128, %v1127
        %v1332 = vpack.c.b16 %v1130, %v1129
        %v1333 = vpack.c.b16 %v1132, %v1131
        %v1334 = vpack.c.b16 %v1134, %v1133
        %v1335 = vpack.c.b16 %v1136, %v1135
        %v1336 = vpack.c.b16 %v1138, %v1137
        %v1337 = vpack.c.b16 %v1140, %v1139
        %v1338 = vpack.c.b16 %v1142, %v1141
        %v1339 = vpack.c.b16 %v1144, %v1143
        %v1340 = vpack.c.b16 %v1146, %v1145
        %v1341 = vpack.c.b16 %v1148, %v1147
        %v1342 = vpack.c.b16 %v1150, %v1149
        %v1343 = vpack.c.b16 %v1152, %v1151
        %v1344 = vpack.c.b16 %v1154, %v1153
        %v1345 = vpack.c.b16 %v1156, %v1155
        %v1346 = vpack.c.b16 %v1158, %v1157
        %v1347 = vpack.c.b16 %v1160, %v1159
        %v1348 = vpack.c.b16 %v1162, %v1161
        %v1349 = vpack.c.b16 %v1164, %v1163
        %v1350 = vpack.c.b16 %v1166, %v1165
        %v1351 = vpack.c.b16 %v1168, %v1167
        %v1352 = vpack.c.b16 %v1170, %v1169
        %v1353 = vpack.c.b16 %v1172, %v1171
        %v1354 = vpack.c.b16 %v1174, %v1173
        %v1355 = vpack.c.b16 %v1176, %v1175
        %v1356 = vpack.c.b16 %v1178, %v1177
        %v1357 = vpack.c.b16 %v1180, %v1179
        %v1358 = vpack.c.b16 %v1182, %v1181
        %v1359 = vpack.c.b16 %v1184, %v1183
        %v1360 = vpack.c.b16 %v1186, %v1185
        %v1361 = vpack.c.b16 %v1188, %v1187
        %v1362 = vpack.c.b16 %v1190, %v1189
        %v1363 = vpack.c.b16 %v1192, %v1191
        %v1364 = vpack.c.b16 %v1194, %v1193
        %v1365 = vpack.c.b16 %v1196, %v1195
        %v1366 = vpack.c.b16 %v1198, %v1197
        %v1367 = vpack.c.b16 %v1200, %v1199
        %v1368 = vpack.c.b16 %v1202, %v1201
        %v1369 = vpack.c.b16 %v1204, %v1203
        %v1370 = vpack.c.b16 %v1206, %v1205
        %v1371 = vpack.c.b16 %v1208, %v1207
        %v1372 = vpack.c.b16 %v1210, %v1209
        %v1373 = vpack.c.b16 %v1212, %v1211
        %v1374 = vpack.c.b16 %v1214, %v1213
        %v1375 = vpack.c.b16 %v1216, %v1215
        %v1376 = vpack.c.b16 %v1218, %v1217
        %v1377 = vpack.c.b16 %v1220, %v1219
        %v1378 = vpack.c.b16 %v1222, %v1221
        %v1379 = vpack.c.b16 %v1224, %v1223
        %v1380 = vpack.c.b16 %v1226, %v1225
        %v1381 = vpack.c.b16 %v1228, %v1227
        %v1382 = vpack.c.b16 %v1230, %v1229
        %v1383 = vpack.c.b16 %v1232, %v1231
        %v1384 = vpack.c.b16 %v1234, %v1233
        %v1385 = vpack.c.b16 %v1236, %v1235
        %v1386 = vpack.c.b16 %v1238, %v1237
        %v1387 = vpack.c.b16 %v1240, %v1239
        %v1388 = vpack.c.b16 %v1242, %v1241
        %v1389 = vpack.c.b16 %v1244, %v1243
        %v1390 = vpack.c.b16 %v1246, %v1245
        %1535 = vmatprep.subr.bf16.mxu0 0
        %1536 = vmatpush1.bf16.msra.mxu0 %v1254
        %1537 = vmatprep.subr.bf16.mxu0 0
        %1538 = vmatpush1.bf16.msra.mxu0 %v1253
        %1539 = vmatprep.subr.bf16.mxu0 0
        %1540 = vmatpush1.bf16.msra.mxu0 %v1252
        %1541 = vmatprep.subr.bf16.mxu0 0
        %1542 = vmatpush1.bf16.msra.mxu0 %v1251
        %1543 = vmatprep.subr.bf16.mxu0 0
        %1544 = vmatpush1.bf16.msra.mxu0 %v1250
        %1545 = vmatprep.subr.bf16.mxu0 0
        %1546 = vmatpush1.bf16.msra.mxu0 %v1249
        %1547 = vmatprep.subr.bf16.mxu0 0
        %1548 = vmatpush1.bf16.msra.mxu0 %v1248
        %1549 = vmatprep.subr.bf16.mxu0 0
        %1550 = vmatpush1.bf16.msra.mxu0 %v1247
        %1551 = vmatprep.subr.bf16.mxu0 0
        %1552 = vmatpush2.bf16.msra.mxu0 %v1262
        %1553 = vmatprep.subr.bf16.mxu0 0
        %1554 = vmatpush2.bf16.msra.mxu0 %v1261
        %1555 = vmatprep.subr.bf16.mxu0 0
        %1556 = vmatpush2.bf16.msra.mxu0 %v1260
        %1557 = vmatprep.subr.bf16.mxu0 0
        %1558 = vmatpush2.bf16.msra.mxu0 %v1259
        %1559 = vmatprep.subr.bf16.mxu0 0
        %1560 = vmatpush2.bf16.msra.mxu0 %v1258
        %1561 = vmatprep.subr.bf16.mxu0 0
        %1562 = vmatpush2.bf16.msra.mxu0 %v1257
        %1563 = vmatprep.subr.bf16.mxu0 0
        %1564 = vmatpush2.bf16.msra.mxu0 %v1256
        %1565 = vmatprep.subr.bf16.mxu0 0
        %1566 = vmatpush2.bf16.msra.mxu0 %v1255
        %1567 = vmatprep.mubr.bf16.mxu0 %v570
        %1568 = vmatmul.mubr.bf16.gmra.mxu0 %v556
        %v1569 = vpop.f32.mrf.mxu0
        %v1570 = vadd.f32 0.0, %v1569
        %v1571 = vpop.f32.mrf.mxu0
        %v1572 = vpop.f32.mrf.mxu0
        %v1573 = vpop.f32.mrf.mxu0
        %1574 = vdwg.mxu0
        %1575 = vmatprep.subr.bf16.mxu0 0
        %1576 = vmatpush1.bf16.msra.mxu0 %v1270
        %1577 = vmatprep.subr.bf16.mxu0 0
        %1578 = vmatpush1.bf16.msra.mxu0 %v1269
        %1579 = vmatprep.subr.bf16.mxu0 0
        %1580 = vmatpush1.bf16.msra.mxu0 %v1268
        %1581 = vmatprep.subr.bf16.mxu0 0
        %1582 = vmatpush1.bf16.msra.mxu0 %v1267
        %1583 = vmatprep.subr.bf16.mxu0 0
        %1584 = vmatpush1.bf16.msra.mxu0 %v1266
        %1585 = vmatprep.subr.bf16.mxu0 0
        %1586 = vmatpush1.bf16.msra.mxu0 %v1265
        %1587 = vmatprep.subr.bf16.mxu0 0
        %1588 = vmatpush1.bf16.msra.mxu0 %v1264
        %1589 = vmatprep.subr.bf16.mxu0 0
        %1590 = vmatpush1.bf16.msra.mxu0 %v1263
        %1591 = vmatprep.subr.bf16.mxu0 0
        %1592 = vmatpush2.bf16.msra.mxu0 %v1278
        %1593 = vmatprep.subr.bf16.mxu0 0
        %1594 = vmatpush2.bf16.msra.mxu0 %v1277
        %1595 = vmatprep.subr.bf16.mxu0 0
        %1596 = vmatpush2.bf16.msra.mxu0 %v1276
        %1597 = vmatprep.subr.bf16.mxu0 0
        %1598 = vmatpush2.bf16.msra.mxu0 %v1275
        %1599 = vmatprep.subr.bf16.mxu0 0
        %1600 = vmatpush2.bf16.msra.mxu0 %v1274
        %1601 = vmatprep.subr.bf16.mxu0 0
        %1602 = vmatpush2.bf16.msra.mxu0 %v1273
        %1603 = vmatprep.subr.bf16.mxu0 0
        %1604 = vmatpush2.bf16.msra.mxu0 %v1272
        %1605 = vmatprep.subr.bf16.mxu0 0
        %1606 = vmatpush2.bf16.msra.mxu0 %v1271
        %1607 = vmatprep.mubr.bf16.mxu0 %v580
        %1608 = vmatmul.mubr.bf16.gmra.mxu0 %v578
        %v1609 = vpop.f32.mrf.mxu0
        %v1610 = vadd.f32 %v1570, %v1609
        %v1611 = vpop.f32.mrf.mxu0
        %v1612 = vpop.f32.mrf.mxu0
        %v1613 = vpop.f32.mrf.mxu0
        %1614 = vdwg.mxu0
        %1615 = vmatprep.subr.bf16.mxu0 0
        %1616 = vmatpush1.bf16.msra.mxu0 %v1286
        %1617 = vmatprep.subr.bf16.mxu0 0
        %1618 = vmatpush1.bf16.msra.mxu0 %v1285
        %1619 = vmatprep.subr.bf16.mxu0 0
        %1620 = vmatpush1.bf16.msra.mxu0 %v1284
        %1621 = vmatprep.subr.bf16.mxu0 0
        %1622 = vmatpush1.bf16.msra.mxu0 %v1283
        %1623 = vmatprep.subr.bf16.mxu0 0
        %1624 = vmatpush1.bf16.msra.mxu0 %v1282
        %1625 = vmatprep.subr.bf16.mxu0 0
        %1626 = vmatpush1.bf16.msra.mxu0 %v1281
        %1627 = vmatprep.subr.bf16.mxu0 0
        %1628 = vmatpush1.bf16.msra.mxu0 %v1280
        %1629 = vmatprep.subr.bf16.mxu0 0
        %1630 = vmatpush1.bf16.msra.mxu0 %v1279
        %1631 = vmatprep.subr.bf16.mxu0 0
        %1632 = vmatpush2.bf16.msra.mxu0 %v1294
        %1633 = vmatprep.subr.bf16.mxu0 0
        %1634 = vmatpush2.bf16.msra.mxu0 %v1293
        %1635 = vmatprep.subr.bf16.mxu0 0
        %1636 = vmatpush2.bf16.msra.mxu0 %v1292
        %1637 = vmatprep.subr.bf16.mxu0 0
        %1638 = vmatpush2.bf16.msra.mxu0 %v1291
        %1639 = vmatprep.subr.bf16.mxu0 0
        %1640 = vmatpush2.bf16.msra.mxu0 %v1290
        %1641 = vmatprep.subr.bf16.mxu0 0
        %1642 = vmatpush2.bf16.msra.mxu0 %v1289
        %1643 = vmatprep.subr.bf16.mxu0 0
        %1644 = vmatpush2.bf16.msra.mxu0 %v1288
        %1645 = vmatprep.subr.bf16.mxu0 0
        %1646 = vmatpush2.bf16.msra.mxu0 %v1287
        %1647 = vmatprep.mubr.bf16.mxu0 %v577
        %1648 = vmatmul.mubr.bf16.gmra.mxu0 %v563
        %v1649 = vpop.f32.mrf.mxu0
        %v1650 = vadd.f32 %v1610, %v1649
        %v1651 = vpop.f32.mrf.mxu0
        %v1652 = vpop.f32.mrf.mxu0
        %v1653 = vpop.f32.mrf.mxu0
        %1654 = vdwg.mxu0
        %1655 = vmatprep.subr.bf16.mxu0 0
        %1656 = vmatpush1.bf16.msra.mxu0 %v1302
        %1657 = vmatprep.subr.bf16.mxu0 0
        %1658 = vmatpush1.bf16.msra.mxu0 %v1301
        %1659 = vmatprep.subr.bf16.mxu0 0
        %1660 = vmatpush1.bf16.msra.mxu0 %v1300
        %1661 = vmatprep.subr.bf16.mxu0 0
        %1662 = vmatpush1.bf16.msra.mxu0 %v1299
        %1663 = vmatprep.subr.bf16.mxu0 0
        %1664 = vmatpush1.bf16.msra.mxu0 %v1298
        %1665 = vmatprep.subr.bf16.mxu0 0
        %1666 = vmatpush1.bf16.msra.mxu0 %v1297
        %1667 = vmatprep.subr.bf16.mxu0 0
        %1668 = vmatpush1.bf16.msra.mxu0 %v1296
        %1669 = vmatprep.subr.bf16.mxu0 0
        %1670 = vmatpush1.bf16.msra.mxu0 %v1295
        %1671 = vmatprep.subr.bf16.mxu0 0
        %1672 = vmatpush2.bf16.msra.mxu0 %v1310
        %1673 = vmatprep.subr.bf16.mxu0 0
        %1674 = vmatpush2.bf16.msra.mxu0 %v1309
        %1675 = vmatprep.subr.bf16.mxu0 0
        %1676 = vmatpush2.bf16.msra.mxu0 %v1308
        %1677 = vmatprep.subr.bf16.mxu0 0
        %1678 = vmatpush2.bf16.msra.mxu0 %v1307
        %1679 = vmatprep.subr.bf16.mxu0 0
        %1680 = vmatpush2.bf16.msra.mxu0 %v1306
        %1681 = vmatprep.subr.bf16.mxu0 0
        %1682 = vmatpush2.bf16.msra.mxu0 %v1305
        %1683 = vmatprep.subr.bf16.mxu0 0
        %1684 = vmatpush2.bf16.msra.mxu0 %v1304
        %1685 = vmatprep.subr.bf16.mxu0 0
        %1686 = vmatpush2.bf16.msra.mxu0 %v1303
        %1687 = vmatprep.mubr.bf16.mxu0 %v581
        %1688 = vmatmul.mubr.bf16.gmra.mxu0 %v579
        %v1689 = vpop.f32.mrf.mxu0
        %v1690 = vadd.f32 %v1650, %v1689
        %v1691 = vpop.f32.mrf.mxu0
        %v1692 = vpop.f32.mrf.mxu0
        %v1693 = vpop.f32.mrf.mxu0
        %1694 = vdwg.mxu0
        %1695 = vmatprep.subr.bf16.mxu0 0
        %1696 = vmatpush1.bf16.msra.mxu0 %v1318
        %1697 = vmatprep.subr.bf16.mxu0 0
        %1698 = vmatpush1.bf16.msra.mxu0 %v1317
        %1699 = vmatprep.subr.bf16.mxu0 0
        %1700 = vmatpush1.bf16.msra.mxu0 %v1316
        %1701 = vmatprep.subr.bf16.mxu0 0
        %1702 = vmatpush1.bf16.msra.mxu0 %v1315
        %1703 = vmatprep.subr.bf16.mxu0 0
        %1704 = vmatpush1.bf16.msra.mxu0 %v1314
        %1705 = vmatprep.subr.bf16.mxu0 0
        %1706 = vmatpush1.bf16.msra.mxu0 %v1313
        %1707 = vmatprep.subr.bf16.mxu0 0
        %1708 = vmatpush1.bf16.msra.mxu0 %v1312
        %1709 = vmatprep.subr.bf16.mxu0 0
        %1710 = vmatpush1.bf16.msra.mxu0 %v1311
        %1711 = vmatprep.subr.bf16.mxu0 0
        %1712 = vmatpush2.bf16.msra.mxu0 %v1326
        %1713 = vmatprep.subr.bf16.mxu0 0
        %1714 = vmatpush2.bf16.msra.mxu0 %v1325
        %1715 = vmatprep.subr.bf16.mxu0 0
        %1716 = vmatpush2.bf16.msra.mxu0 %v1324
        %1717 = vmatprep.subr.bf16.mxu0 0
        %1718 = vmatpush2.bf16.msra.mxu0 %v1323
        %1719 = vmatprep.subr.bf16.mxu0 0
        %1720 = vmatpush2.bf16.msra.mxu0 %v1322
        %1721 = vmatprep.subr.bf16.mxu0 0
        %1722 = vmatpush2.bf16.msra.mxu0 %v1321
        %1723 = vmatprep.subr.bf16.mxu0 0
        %1724 = vmatpush2.bf16.msra.mxu0 %v1320
        %1725 = vmatprep.subr.bf16.mxu0 0
        %1726 = vmatpush2.bf16.msra.mxu0 %v1319
        %1727 = vmatprep.mubr.bf16.mxu0 %v619
        %1728 = vmatmul.mubr.bf16.gmra.mxu0 %v605
        %v1729 = vpop.f32.mrf.mxu0
        %v1730 = vadd.f32 %v1690, %v1729
        %v1731 = vpop.f32.mrf.mxu0
        %v1732 = vpop.f32.mrf.mxu0
        %v1733 = vpop.f32.mrf.mxu0
        %1734 = vdwg.mxu0
        %1735 = vmatprep.subr.bf16.mxu0 0
        %1736 = vmatpush1.bf16.msra.mxu0 %v1334
        %1737 = vmatprep.subr.bf16.mxu0 0
        %1738 = vmatpush1.bf16.msra.mxu0 %v1333
        %1739 = vmatprep.subr.bf16.mxu0 0
        %1740 = vmatpush1.bf16.msra.mxu0 %v1332
        %1741 = vmatprep.subr.bf16.mxu0 0
        %1742 = vmatpush1.bf16.msra.mxu0 %v1331
        %1743 = vmatprep.subr.bf16.mxu0 0
        %1744 = vmatpush1.bf16.msra.mxu0 %v1330
        %1745 = vmatprep.subr.bf16.mxu0 0
        %1746 = vmatpush1.bf16.msra.mxu0 %v1329
        %1747 = vmatprep.subr.bf16.mxu0 0
        %1748 = vmatpush1.bf16.msra.mxu0 %v1328
        %1749 = vmatprep.subr.bf16.mxu0 0
        %1750 = vmatpush1.bf16.msra.mxu0 %v1327
        %1751 = vmatprep.subr.bf16.mxu0 0
        %1752 = vmatpush2.bf16.msra.mxu0 %v1342
        %1753 = vmatprep.subr.bf16.mxu0 0
        %1754 = vmatpush2.bf16.msra.mxu0 %v1341
        %1755 = vmatprep.subr.bf16.mxu0 0
        %1756 = vmatpush2.bf16.msra.mxu0 %v1340
        %1757 = vmatprep.subr.bf16.mxu0 0
        %1758 = vmatpush2.bf16.msra.mxu0 %v1339
        %1759 = vmatprep.subr.bf16.mxu0 0
        %1760 = vmatpush2.bf16.msra.mxu0 %v1338
        %1761 = vmatprep.subr.bf16.mxu0 0
        %1762 = vmatpush2.bf16.msra.mxu0 %v1337
        %1763 = vmatprep.subr.bf16.mxu0 0
        %1764 = vmatpush2.bf16.msra.mxu0 %v1336
        %1765 = vmatprep.subr.bf16.mxu0 0
        %1766 = vmatpush2.bf16.msra.mxu0 %v1335
        %1767 = vmatprep.mubr.bf16.mxu0 %v629
        %1768 = vmatmul.mubr.bf16.gmra.mxu0 %v627
        %v1769 = vpop.f32.mrf.mxu0
        %v1770 = vadd.f32 %v1730, %v1769
        %v1771 = vpop.f32.mrf.mxu0
        %v1772 = vpop.f32.mrf.mxu0
        %v1773 = vpop.f32.mrf.mxu0
        %1774 = vdwg.mxu0
        %1775 = vmatprep.subr.bf16.mxu0 0
        %1776 = vmatpush1.bf16.msra.mxu0 %v1350
        %1777 = vmatprep.subr.bf16.mxu0 0
        %1778 = vmatpush1.bf16.msra.mxu0 %v1349
        %1779 = vmatprep.subr.bf16.mxu0 0
        %1780 = vmatpush1.bf16.msra.mxu0 %v1348
        %1781 = vmatprep.subr.bf16.mxu0 0
        %1782 = vmatpush1.bf16.msra.mxu0 %v1347
        %1783 = vmatprep.subr.bf16.mxu0 0
        %1784 = vmatpush1.bf16.msra.mxu0 %v1346
        %1785 = vmatprep.subr.bf16.mxu0 0
        %1786 = vmatpush1.bf16.msra.mxu0 %v1345
        %1787 = vmatprep.subr.bf16.mxu0 0
        %1788 = vmatpush1.bf16.msra.mxu0 %v1344
        %1789 = vmatprep.subr.bf16.mxu0 0
        %1790 = vmatpush1.bf16.msra.mxu0 %v1343
        %1791 = vmatprep.subr.bf16.mxu0 0
        %1792 = vmatpush2.bf16.msra.mxu0 %v1358
        %1793 = vmatprep.subr.bf16.mxu0 0
        %1794 = vmatpush2.bf16.msra.mxu0 %v1357
        %1795 = vmatprep.subr.bf16.mxu0 0
        %1796 = vmatpush2.bf16.msra.mxu0 %v1356
        %1797 = vmatprep.subr.bf16.mxu0 0
        %1798 = vmatpush2.bf16.msra.mxu0 %v1355
        %1799 = vmatprep.subr.bf16.mxu0 0
        %1800 = vmatpush2.bf16.msra.mxu0 %v1354
        %1801 = vmatprep.subr.bf16.mxu0 0
        %1802 = vmatpush2.bf16.msra.mxu0 %v1353
        %1803 = vmatprep.subr.bf16.mxu0 0
        %1804 = vmatpush2.bf16.msra.mxu0 %v1352
        %1805 = vmatprep.subr.bf16.mxu0 0
        %1806 = vmatpush2.bf16.msra.mxu0 %v1351
        %1807 = vmatprep.mubr.bf16.mxu0 %v626
        %1808 = vmatmul.mubr.bf16.gmra.mxu0 %v612
        %v1809 = vpop.f32.mrf.mxu0
        %v1810 = vadd.f32 %v1770, %v1809
        %v1811 = vpop.f32.mrf.mxu0
        %v1812 = vpop.f32.mrf.mxu0
        %v1813 = vpop.f32.mrf.mxu0
        %1814 = vdwg.mxu0
        %1815 = vmatprep.subr.bf16.mxu0 0
        %1816 = vmatpush1.bf16.msra.mxu0 %v1366
        %1817 = vmatprep.subr.bf16.mxu0 0
        %1818 = vmatpush1.bf16.msra.mxu0 %v1365
        %1819 = vmatprep.subr.bf16.mxu0 0
        %1820 = vmatpush1.bf16.msra.mxu0 %v1364
        %1821 = vmatprep.subr.bf16.mxu0 0
        %1822 = vmatpush1.bf16.msra.mxu0 %v1363
        %1823 = vmatprep.subr.bf16.mxu0 0
        %1824 = vmatpush1.bf16.msra.mxu0 %v1362
        %1825 = vmatprep.subr.bf16.mxu0 0
        %1826 = vmatpush1.bf16.msra.mxu0 %v1361
        %1827 = vmatprep.subr.bf16.mxu0 0
        %1828 = vmatpush1.bf16.msra.mxu0 %v1360
        %1829 = vmatprep.subr.bf16.mxu0 0
        %1830 = vmatpush1.bf16.msra.mxu0 %v1359
        %1831 = vmatprep.subr.bf16.mxu0 0
        %1832 = vmatpush2.bf16.msra.mxu0 %v1374
        %1833 = vmatprep.subr.bf16.mxu0 0
        %1834 = vmatpush2.bf16.msra.mxu0 %v1373
        %1835 = vmatprep.subr.bf16.mxu0 0
        %1836 = vmatpush2.bf16.msra.mxu0 %v1372
        %1837 = vmatprep.subr.bf16.mxu0 0
        %1838 = vmatpush2.bf16.msra.mxu0 %v1371
        %1839 = vmatprep.subr.bf16.mxu0 0
        %1840 = vmatpush2.bf16.msra.mxu0 %v1370
        %1841 = vmatprep.subr.bf16.mxu0 0
        %1842 = vmatpush2.bf16.msra.mxu0 %v1369
        %1843 = vmatprep.subr.bf16.mxu0 0
        %1844 = vmatpush2.bf16.msra.mxu0 %v1368
        %1845 = vmatprep.subr.bf16.mxu0 0
        %1846 = vmatpush2.bf16.msra.mxu0 %v1367
        %1847 = vmatprep.mubr.bf16.mxu0 %v630
        %1848 = vmatmul.mubr.bf16.gmra.mxu0 %v628
        %v1849 = vpop.f32.mrf.mxu0
        %v1850 = vadd.f32 %v1810, %v1849
        %v1851 = vpop.f32.mrf.mxu0
        %v1852 = vpop.f32.mrf.mxu0
        %v1853 = vpop.f32.mrf.mxu0
        %1854 = vdwg.mxu0
        %1855 = vmatprep.subr.bf16.mxu0 0
        %1856 = vmatpush1.bf16.msra.mxu0 %v1382
        %1857 = vmatprep.subr.bf16.mxu0 0
        %1858 = vmatpush1.bf16.msra.mxu0 %v1381
        %1859 = vmatprep.subr.bf16.mxu0 0
        %1860 = vmatpush1.bf16.msra.mxu0 %v1380
        %1861 = vmatprep.subr.bf16.mxu0 0
        %1862 = vmatpush1.bf16.msra.mxu0 %v1379
        %1863 = vmatprep.subr.bf16.mxu0 0
        %1864 = vmatpush1.bf16.msra.mxu0 %v1378
        %1865 = vmatprep.subr.bf16.mxu0 0
        %1866 = vmatpush1.bf16.msra.mxu0 %v1377
        %1867 = vmatprep.subr.bf16.mxu0 0
        %1868 = vmatpush1.bf16.msra.mxu0 %v1376
        %1869 = vmatprep.subr.bf16.mxu0 0
        %1870 = vmatpush1.bf16.msra.mxu0 %v1375
        %1871 = vmatprep.subr.bf16.mxu0 0
        %1872 = vmatpush2.bf16.msra.mxu0 %v1390
        %1873 = vmatprep.subr.bf16.mxu0 0
        %1874 = vmatpush2.bf16.msra.mxu0 %v1389
        %1875 = vmatprep.subr.bf16.mxu0 0
        %1876 = vmatpush2.bf16.msra.mxu0 %v1388
        %1877 = vmatprep.subr.bf16.mxu0 0
        %1878 = vmatpush2.bf16.msra.mxu0 %v1387
        %1879 = vmatprep.subr.bf16.mxu0 0
        %1880 = vmatpush2.bf16.msra.mxu0 %v1386
        %1881 = vmatprep.subr.bf16.mxu0 0
        %1882 = vmatpush2.bf16.msra.mxu0 %v1385
        %1883 = vmatprep.subr.bf16.mxu0 0
        %1884 = vmatpush2.bf16.msra.mxu0 %v1384
        %1885 = vmatprep.subr.bf16.mxu0 0
        %1886 = vmatpush2.bf16.msra.mxu0 %v1383
        %1887 = vmatprep.mubr.bf16.mxu0 %v652
        %1888 = vmatmul.mubr.bf16.gmra.mxu0 %v645
        %v1889 = vpop.f32.mrf.mxu0
        %v1890 = vadd.f32 %v1850, %v1889
        %v1891 = vpop.f32.mrf.mxu0
        %v1892 = vpop.f32.mrf.mxu0
        %v1893 = vpop.f32.mrf.mxu0
        %1894 = vdwg.mxu0
        %v1895 = vadd.f32 %v238, %v1890
        %1896 = vst [vmem:[#allocation2] sm:$0x3] %v1895
        %p1897 = scmp.eq.s32.totalorder %s17, 3
        // Predicated region
        $region45: #{femnist_net_forward.3} parent=39 // pred_check
          %p1898 = pneg %p1897
        $region46: #{femnist_net_forward.3} parent=39 // pred_check_branch
          %1900 = sbr.rel (%p1898) target = $region48
        $region47: #{femnist_net_forward.3} parent=39 // pred_region
          %v1901 = vld [vmem:[#allocation2] sm:$0x3]
          %v1902 = vld [vmem:[%s2] sm:$0x1]
          %v1904 = vlaneseq
          %v1905 = vshrl.u32 %v1904, 7
          %v1906 = vsub.s32 0, %v1905
          %v1907 = vrot.slane %v1902, %v1906
          %v1909 = vadd.f32 %v1901, %v1907
          %v1910 = vld [vmem:[%s3] sm:$0xff]
          %v1911 = vld [vmem:[%s3 + $0x8] sm:$0xff]
          %v1912 = vld [vmem:[%s3 + $0x10] sm:$0xff]
          %v1913 = vld [vmem:[%s3 + $0x18] sm:$0xff]
          %v1914 = vld [vmem:[%s3 + $0x20] sm:$0xff]
          %v1915 = vld [vmem:[%s3 + $0x28] sm:$0xff]
          %v1916 = vld [vmem:[%s3 + $0x30] sm:$0xff]
          %v1917 = vld [vmem:[%s3 + $0x38] sm:$0xff]
          %v1918 = vld [vmem:[%s3 + $0x40] sm:$0xff]
          %v1919 = vld [vmem:[%s3 + $0x48] sm:$0xff]
          %v1920 = vld [vmem:[%s3 + $0x50] sm:$0xff]
          %v1921 = vld [vmem:[%s3 + $0x58] sm:$0xff]
          %v1922 = vld [vmem:[%s3 + $0x60] sm:$0xff]
          %v1923 = vld [vmem:[%s3 + $0x68] sm:$0xff]
          %v1924 = vld [vmem:[%s3 + $0x70] sm:$0xff]
          %v1925 = vld [vmem:[%s3 + $0x78] sm:$0xff]
          %v1926 = vld [vmem:[%s4] sm:$0x1]
          %v1928 = vlaneseq
          %v1929 = vshrl.u32 %v1928, 7
          %v1930 = vsub.s32 0, %v1929
          %v1931 = vrot.slane %v1926, %v1930
          %1933 = vmatprep.subr.mxu0 0.0
          %1934 = vmatpush1.msra.mxu0 %v1925
          %1935 = vmatprep.subr.mxu0 0.0
          %1936 = vmatpush1.msra.mxu0 %v1924
          %1937 = vmatprep.subr.mxu0 0.0
          %1938 = vmatpush1.msra.mxu0 %v1923
          %1939 = vmatprep.subr.mxu0 0.0
          %1940 = vmatpush1.msra.mxu0 %v1922
          %1941 = vmatprep.subr.mxu0 0.0
          %1942 = vmatpush1.msra.mxu0 %v1921
          %1943 = vmatprep.subr.mxu0 0.0
          %1944 = vmatpush1.msra.mxu0 %v1920
          %1945 = vmatprep.subr.mxu0 0.0
          %1946 = vmatpush1.msra.mxu0 %v1919
          %1947 = vmatprep.subr.mxu0 0.0
          %1948 = vmatpush1.msra.mxu0 %v1918
          %1949 = vmatprep.subr.mxu0 0.0
          %1950 = vmatpush1.msra.mxu0 %v1917
          %1951 = vmatprep.subr.mxu0 0.0
          %1952 = vmatpush1.msra.mxu0 %v1916
          %1953 = vmatprep.subr.mxu0 0.0
          %1954 = vmatpush1.msra.mxu0 %v1915
          %1955 = vmatprep.subr.mxu0 0.0
          %1956 = vmatpush1.msra.mxu0 %v1914
          %1957 = vmatprep.subr.mxu0 0.0
          %1958 = vmatpush1.msra.mxu0 %v1913
          %1959 = vmatprep.subr.mxu0 0.0
          %1960 = vmatpush1.msra.mxu0 %v1912
          %1961 = vmatprep.subr.mxu0 0.0
          %1962 = vmatpush1.msra.mxu0 %v1911
          %1963 = vmatprep.subr.mxu0 0.0
          %1964 = vmatpush1.msra.mxu0 %v1910
          %1965 = vmatprep.subr.mxu0 0.0
          %1966 = vmatpush2.msra.mxu0 0.0
          %1967 = vmatprep.subr.mxu0 0.0
          %1968 = vmatpush2.msra.mxu0 0.0
          %1969 = vmatprep.subr.mxu0 0.0
          %1970 = vmatpush2.msra.mxu0 0.0
          %1971 = vmatprep.subr.mxu0 0.0
          %1972 = vmatpush2.msra.mxu0 0.0
          %1973 = vmatprep.subr.mxu0 0.0
          %1974 = vmatpush2.msra.mxu0 0.0
          %1975 = vmatprep.subr.mxu0 0.0
          %1976 = vmatpush2.msra.mxu0 0.0
          %1977 = vmatprep.subr.mxu0 0.0
          %1978 = vmatpush2.msra.mxu0 0.0
          %1979 = vmatprep.subr.mxu0 0.0
          %1980 = vmatpush2.msra.mxu0 0.0
          %1981 = vmatprep.subr.mxu0 0.0
          %1982 = vmatpush2.msra.mxu0 0.0
          %1983 = vmatprep.subr.mxu0 0.0
          %1984 = vmatpush2.msra.mxu0 0.0
          %1985 = vmatprep.subr.mxu0 0.0
          %1986 = vmatpush2.msra.mxu0 0.0
          %1987 = vmatprep.subr.mxu0 0.0
          %1988 = vmatpush2.msra.mxu0 0.0
          %1989 = vmatprep.subr.mxu0 0.0
          %1990 = vmatpush2.msra.mxu0 0.0
          %1991 = vmatprep.subr.mxu0 0.0
          %1992 = vmatpush2.msra.mxu0 0.0
          %1993 = vmatprep.subr.mxu0 0.0
          %1994 = vmatpush2.msra.mxu0 0.0
          %1995 = vmatprep.subr.mxu0 0.0
          %1996 = vmatpush2.msra.mxu0 0.0
          %1997 = vmatprep.mubr.f32.mxu0 0.0
          %1998 = vmatmul.mubr.f32.gmra.mxu0 %v1909
          %v1999 = vpop.f32.mrf.mxu0
          %v2000 = vadd.f32 %v1931, %v1999
          %v2001 = vpop.f32.mrf.mxu0
          %2002 = vdwg.mxu0
          %vm2003 = vcmask 500736
          %2004 = vst.msk [vmem:[#allocation3] sm:$0x3] %vm2003, %v2000
        $region48: #{femnist_net_forward.3} parent=39 // pred_fallthru
          _
        // Predicated region
        $region49: #{femnist_net_forward.3} parent=39 // pred_check
          %p2005 = pneg %p145
        $region50: #{femnist_net_forward.3} parent=39 // pred_check_branch
          %2007 = sbr.rel (%p2005) target = $region52
        $region51: #{femnist_net_forward.3} parent=39 // pred_region
          %s2009 = ssub.s32 32, 32
          %2010 = vsyncadd [#allocation4], %s2009
          %s2012 = sshll.u32 [#allocation3], 4
          %s2013 = int_to_ptr.vmem [resolvable:$true] %s2012
          %2015 = dma.vmem_to_hbm [thread:$0]  %s2013, 32, %s5, [#allocation4]
        $region52: #{femnist_net_forward.3} parent=39 // pred_fallthru
          _
        // Predicated region
        $region53: #{femnist_net_forward.3} parent=39 // pred_check
          %p2016 = pneg %p145
        $region54: #{femnist_net_forward.3} parent=39 // pred_check_branch
          %2018 = sbr.rel (%p2016) target = $region56
        $region55: #{femnist_net_forward.3} parent=39 // pred_region
          %2019 = dma.done [#allocation4], 32
        $region56: #{femnist_net_forward.3} parent=39 // pred_fallthru
          _
      $region40: #{femnist_net_forward.3} parent=5 // pred_fallthru
        _
      %p2020 = scmp.le.s32.totalorder 2, %s12
      // Predicated region
      $region57: #{femnist_net_forward.3} parent=5 // pred_check
        %p2021 = pneg %p2020
      $region58: #{femnist_net_forward.3} parent=5 // pred_check_branch
        %2023 = sbr.rel (%p2021) target = $region60
      $region59: #{femnist_net_forward.3} parent=5 // pred_region
        %s2024 = ssub.s32 %s12, 2
      $region60: #{femnist_net_forward.3} parent=5 // pred_fallthru
        _
    $region6: #{femnist_net_forward.3} parent=1 // loop_footer
      %s16 = sadd.s32 1, %s12
    $region7: #{femnist_net_forward.3} parent=1 // loop_footer_branch
      %11 = sbr.rel target = $region3
    $region8: #{femnist_net_forward.3} parent=1 // loop_exit
      _
    %2025 = vsyncpa [#allocation4], 1
    %s2026 = scalar_lea.sflag [#allocation4], 1
    %2027 = vsyncpa %s2026, 1

</llo_original>
